<compile_context>
chip_gen: v5e
topology: v5e:2x2
jax: 0.10.0
libtpu: 0.0.40
codegen_flags: <defaults>
</compile_context>

<pallas_src>
import jax
import jax.numpy as jnp
from jax.experimental import pallas as pl
from jax.experimental.pallas import tpu as pltpu


def fc_head_kernel(x_ref, w_ref, b_ref, o_ref):
    # x_ref: (TM, H) patch-feature rows, w_ref: (H, Dout), b_ref: (1, Dout)
    y = jnp.dot(x_ref[...], w_ref[...],
                preferred_element_type=jnp.float32) + b_ref[...]
    # Dropout(p=0.5) is identity in eval mode; tanh goes to the EUP slot.
    o_ref[...] = jnp.tanh(y).astype(o_ref.dtype)


def image_encoder_forward(last_hidden_state, w_fc, b_fc, *, tm=256):
    """Pallas forward: drop CLS token, then fc = Tanh(Dropout(Linear(.)))."""
    B, S, H = last_hidden_state.shape
    N = S - 1                      # number of image patches (CLS removed)
    Dout = w_fc.shape[1]

    # Flatten (B, N, H) -> (B*N, H) rows and pad rows to a multiple of tm so
    # every grid step sees a full, (8,128)-aligned tile and a large MXU M dim.
    x = last_hidden_state[:, 1:, :].reshape(B * N, H)
    rows = B * N
    # Don't let the tile exceed the (padded-to-8) row count for tiny inputs.
    tm = min(tm, 8 * pl.cdiv(rows, 8))
    rows_pad = tm * pl.cdiv(rows, tm)
    if rows_pad != rows:
        x = jnp.pad(x, ((0, rows_pad - rows), (0, 0)))

    out = pl.pallas_call(
        fc_head_kernel,
        out_shape=jax.ShapeDtypeStruct((rows_pad, Dout), last_hidden_state.dtype),
        grid_spec=pltpu.PrefetchScalarGridSpec(
            num_scalar_prefetch=0,
            grid=(rows_pad // tm,),
            in_specs=[
                pl.BlockSpec((tm, H), lambda i: (i, 0)),     # patch rows (tiled)
                pl.BlockSpec((H, Dout), lambda i: (0, 0)),   # fc weight (resident)
                pl.BlockSpec((1, Dout), lambda i: (0, 0)),   # fc bias   (resident)
            ],
            out_specs=pl.BlockSpec((tm, Dout), lambda i: (i, 0)),
        ),
        compiler_params=pltpu.CompilerParams(
            dimension_semantics=("parallel",)),
    )(x, w_fc, b_fc)

    return out[:rows].reshape(B, N, Dout)


def reference_forward(last_hidden_state, w_fc, b_fc):
    """Pure-JAX reference mirroring the PyTorch forward (eval mode)."""
    feats = last_hidden_state[:, 1:, :]
    y = jnp.einsum('bnh,hd->bnd', feats, w_fc,
                   precision=jax.lax.Precision.HIGHEST) + b_fc
    return jnp.tanh(y)


if __name__ == "__main__":
    # ViT-base geometry: 196 patches (+1 CLS token), hidden_size = 768.
    # dim_out chosen as 256 (multiple of 128 -> lane-dense stores).
    B, S, H, DIM_OUT = 2, 197, 768, 256

    key = jax.random.PRNGKey(0)
    k_feat, k_w, k_b = jax.random.split(key, 3)

    # TODO(synk): the pretrained ViTModel backbone
    # ('google/vit-base-patch16-224-in21k') has no self-contained Pallas
    # equivalent (external weights + full transformer); synthetic
    # last_hidden_state features stand in for its output here.
    last_hidden_state = jax.random.normal(k_feat, (B, S, H), dtype=jnp.float32)

    # Torch-like Linear init scale; weight stored as (in, out) so y = x @ W + b.
    scale = 1.0 / (H ** 0.5)
    w_fc = jax.random.uniform(k_w, (H, DIM_OUT), jnp.float32, -scale, scale)
    b_fc = jax.random.uniform(k_b, (1, DIM_OUT), jnp.float32, -scale, scale)

    out = image_encoder_forward(last_hidden_state, w_fc, b_fc, tm=256)
    out = jax.block_until_ready(out)

    ref = reference_forward(last_hidden_state, w_fc, b_fc)
    assert out.shape == (B, S - 1, DIM_OUT)
    assert jnp.allclose(out, ref, atol=2e-3, rtol=2e-3), "mismatch vs reference"

    print("KERNEL_OK")
</pallas_src>

<mosaic_0001>
module attributes {stable_mosaic.version = 11 : i64} {
  func.func @fc_head_kernel(%arg0: i32, %arg1: memref<256x768xf32, #tpu.memory_space<vmem>>, %arg2: memref<768x256xf32, #tpu.memory_space<vmem>>, %arg3: memref<1x256xf32, #tpu.memory_space<vmem>>, %arg4: memref<256x256xf32, #tpu.memory_space<vmem>>) attributes {dimension_semantics = [#tpu.dimension_semantics<parallel>], iteration_bounds = array<i64: 2>, scalar_prefetch = 0 : i64, scratch_operands = 0 : i64, tpu.core_type = #tpu.core_type<tc>, window_params = [{transform_indices = @transform_0, window_bounds = array<i64: 256, 768>}, {pipeline_mode = #tpu.pipeline_mode<synchronous>, transform_indices = @transform_1, window_bounds = array<i64: 768, 256>}, {pipeline_mode = #tpu.pipeline_mode<synchronous>, transform_indices = @transform_2, window_bounds = array<i64: 1, 256>}, {transform_indices = @transform_3, window_bounds = array<i64: 256, 256>}]} {
    %c0 = arith.constant 0 : index
    %c0_0 = arith.constant 0 : index
    %0 = vector.load %arg1[%c0, %c0_0] : memref<256x768xf32, #tpu.memory_space<vmem>>, vector<256x768xf32>
    %c0_1 = arith.constant 0 : index
    %c0_2 = arith.constant 0 : index
    %1 = vector.load %arg2[%c0_1, %c0_2] : memref<768x256xf32, #tpu.memory_space<vmem>>, vector<768x256xf32>
    %cst = arith.constant dense<0.000000e+00> : vector<256x256xf32>
    %2 = tpu.matmul %0, %1, %cst {dimension_numbers = #tpu.dot_dimension_numbers<[1], [0], [0], [1], [0, 0, 1, 1], [], []>} : vector<256x768xf32>, vector<768x256xf32>, vector<256x256xf32> -> vector<256x256xf32>
    %c0_3 = arith.constant 0 : index
    %c0_4 = arith.constant 0 : index
    %3 = vector.load %arg3[%c0_3, %c0_4] : memref<1x256xf32, #tpu.memory_space<vmem>>, vector<1x256xf32>
    %4 = vector.broadcast %3 : vector<1x256xf32> to vector<256x256xf32>
    %5 = arith.addf %2, %4 : vector<256x256xf32>
    %6 = math.tanh %5 : vector<256x256xf32>
    %c0_5 = arith.constant 0 : index
    %c0_6 = arith.constant 0 : index
    %7 = vector.load %arg4[%c0_5, %c0_6] : memref<256x256xf32, #tpu.memory_space<vmem>>, vector<256x256xf32>
    tpu.vector_store %arg4[%c0_5, %c0_6], %6 {strides = array<i32>} : memref<256x256xf32, #tpu.memory_space<vmem>>, vector<256x256xf32>,
    return
  }
  func.func @transform_0(%arg0: i32) -> (i32, i32) {
    %c0_i32 = arith.constant 0 : i32
    %c0_i32_0 = arith.constant 0 : i32
    return %arg0, %c0_i32 : i32, i32
  }
  func.func @transform_1(%arg0: i32) -> (i32, i32) {
    %c0_i32 = arith.constant 0 : i32
    %c0_i32_0 = arith.constant 0 : i32
    %c0_i32_1 = arith.constant 0 : i32
    return %c0_i32, %c0_i32_0 : i32, i32
  }
  func.func @transform_2(%arg0: i32) -> (i32, i32) {
    %c0_i32 = arith.constant 0 : i32
    %c0_i32_0 = arith.constant 0 : i32
    %c0_i32_1 = arith.constant 0 : i32
    return %c0_i32, %c0_i32_0 : i32, i32
  }
  func.func @transform_3(%arg0: i32) -> (i32, i32) {
    %c0_i32 = arith.constant 0 : i32
    %c0_i32_0 = arith.constant 0 : i32
    return %arg0, %c0_i32 : i32, i32
  }
}

</mosaic_0001>

<llo_original>
// kernel: tpu_custom_call.1
$region0: #{tpu_custom_call.1}
  #allocation0 [shape = 'u32[]', space=smem, size = 0x4, offset = 0x4, fixed_abs, tag = 'smem constant byte address 0x4 - core index']
  #allocation1 [shape = 'u32[72,128]{1,0:T(1,128)}', space=vmem, size = 0x9000, scoped, tag = 'internal scratch']
  %s0 = inlined_call_operand.hbm [shape: f32[512,768], index: 0, kind: input, shape index: {}]
  %s1 = inlined_call_operand.hbm [shape: f32[768,256], index: 1, kind: input, shape index: {}]
  %s2 = inlined_call_operand.hbm [shape: f32[1,256], index: 2, kind: input, shape index: {}]
  %s3 = inlined_call_operand.hbm [shape: f32[512,256], index: 3, kind: output, shape index: {}]
  %s4 = sld [smem:[#allocation0]]
  $region57: #{tpu_custom_call.1} parent=0
    _
  %s6 = ssub.s32 1, %s4
  %s7 = scalar_select 0, %s6, %s4
  $region1: #{tpu_custom_call.1} parent=0
    #allocation2 [shape = 'u8[1572864]{0}', space=vmem, size = 0x180000, scoped, tag = 'input window, operand 0']
    #allocation3 [shape = 's32[2]{0}', space=sflag, size = 0x8, scoped, tag = 'scoped memory for tpu_custom_call.1']
    #allocation4 [shape = 's32[2]{0}', space=sflag, size = 0x8, scoped, tag = 'scoped memory for tpu_custom_call.1']
    #allocation5 [shape = 'u8[786432]{0}', space=vmem, size = 0xc0000, scoped, tag = 'input window, operand 1, single buffered']
    #allocation6 [shape = 's32[1]{0}', space=sflag, size = 0x4, scoped, tag = 'scoped memory for tpu_custom_call.1']
    #allocation7 [shape = 'u8[1024]{0}', space=vmem, size = 0x400, scoped, tag = 'input window, operand 2, single buffered']
    #allocation8 [shape = 'u8[524288]{0}', space=vmem, size = 0x80000, scoped, tag = 'output window, operand 0']
    %8 = vsyncpa [#allocation3], 0
    %s9 = scalar_lea.sflag [#allocation3], 1
    %10 = vsyncpa %s9, 0
    %11 = vsyncpa [#allocation6], 0
    %12 = vsyncpa [#allocation4], 0
    %s13 = scalar_lea.sflag [#allocation4], 1
    %14 = vsyncpa %s13, 0
    loop: start=0, step=1, limit=4
    $region2: #{tpu_custom_call.1} parent=1 // loop_pre_header
      _
    $region3: #{tpu_custom_call.1} parent=1 // loop_header
      %s16 = sphi 0, %s20
      %p17 = scmp.ge.s32.totalorder %s16, 4
      %s26 = sphi 0, %s28
      %s29 = sphi 0, %s26
      %s30 = sphi 0, %s29
      %s46 = sphi 0, %s30
      %s50 = sphi 0, %s50
      %s52 = sphi 0, %s50
      %s53 = sphi 0, %s52
      %s67 = sphi 0, %s53
      %s71 = sphi 0, %s71
      %s73 = sphi 0, %s71
      %s74 = sphi 0, %s73
      %s88 = sphi 0, %s74
      %s94 = sphi 0, %s96
      %s97 = sphi 0, %s94
      %s98 = sphi 0, %s97
      %s114 = sphi 0, %s98
    $region4: #{tpu_custom_call.1} parent=1 // loop_header_branch
      %19 = sbr.rel (%p17) target = $region8
    $region5: #{tpu_custom_call.1} parent=1 // loop_body
      %s21 = ssub.s32 %s16, 1
      %s22 = ssub.s32 %s16, 2
      %s23 = sadd.s32 %s16, 1
      %s24 = ssub.s32 %s16, %s23
      %p25 = scmp.eq.s32.totalorder %s24, 0
      %s27 = sadd.s32 %s26, 1
      %s28 = scalar_select %p25, %s26, %s27
      %p31 = pneg %p25
      %p32 = scmp.eq.s32.totalorder %s16, 1
      %p33 = por %p31, %p32
      %p34 = scmp.ne.s32.totalorder %s26, %s29
      %p35 = scmp.eq.s32.totalorder %s16, 0
      %p36 = por %p34, %p35
      %p37 = scmp.ne.s32.totalorder %s26, %s29
      %p38 = scmp.eq.s32.totalorder %s21, 1
      %p39 = por %p37, %p38
      %p40 = scmp.ne.s32.totalorder %s29, %s30
      %p41 = scmp.eq.s32.totalorder %s21, 0
      %p42 = por %p40, %p41
      %p43 = scmp.ne.s32.totalorder %s29, %s30
      %p44 = scmp.eq.s32.totalorder %s22, 1
      %p45 = por %p43, %p44
      %p47 = scmp.ne.s32.totalorder %s30, %s46
      %p48 = scmp.eq.s32.totalorder %s22, 0
      %p49 = por %p47, %p48
      %s51 = sadd.s32 %s50, 1
      %p54 = scmp.eq.s32.totalorder %s16, 1
      %p55 = scmp.ne.s32.totalorder %s50, %s52
      %p56 = scmp.eq.s32.totalorder %s16, 0
      %p57 = por %p55, %p56
      %p58 = scmp.ne.s32.totalorder %s50, %s52
      %p59 = scmp.eq.s32.totalorder %s21, 1
      %p60 = por %p58, %p59
      %p61 = scmp.ne.s32.totalorder %s52, %s53
      %p62 = scmp.eq.s32.totalorder %s21, 0
      %p63 = por %p61, %p62
      %p64 = scmp.ne.s32.totalorder %s52, %s53
      %p65 = scmp.eq.s32.totalorder %s22, 1
      %p66 = por %p64, %p65
      %p68 = scmp.ne.s32.totalorder %s53, %s67
      %p69 = scmp.eq.s32.totalorder %s22, 0
      %p70 = por %p68, %p69
      %s72 = sadd.s32 %s71, 1
      %p75 = scmp.eq.s32.totalorder %s16, 1
      %p76 = scmp.ne.s32.totalorder %s71, %s73
      %p77 = scmp.eq.s32.totalorder %s16, 0
      %p78 = por %p76, %p77
      %p79 = scmp.ne.s32.totalorder %s71, %s73
      %p80 = scmp.eq.s32.totalorder %s21, 1
      %p81 = por %p79, %p80
      %p82 = scmp.ne.s32.totalorder %s73, %s74
      %p83 = scmp.eq.s32.totalorder %s21, 0
      %p84 = por %p82, %p83
      %p85 = scmp.ne.s32.totalorder %s73, %s74
      %p86 = scmp.eq.s32.totalorder %s22, 1
      %p87 = por %p85, %p86
      %p89 = scmp.ne.s32.totalorder %s74, %s88
      %p90 = scmp.eq.s32.totalorder %s22, 0
      %p91 = por %p89, %p90
      %s92 = ssub.s32 %s16, %s23
      %p93 = scmp.eq.s32.totalorder %s92, 0
      %s95 = sadd.s32 %s94, 1
      %s96 = scalar_select %p93, %s94, %s95
      %p99 = pneg %p93
      %p100 = scmp.eq.s32.totalorder %s16, 1
      %p101 = por %p99, %p100
      %p102 = scmp.ne.s32.totalorder %s94, %s97
      %p103 = scmp.eq.s32.totalorder %s16, 0
      %p104 = por %p102, %p103
      %p105 = scmp.ne.s32.totalorder %s94, %s97
      %p106 = scmp.eq.s32.totalorder %s21, 1
      %p107 = por %p105, %p106
      %p108 = scmp.ne.s32.totalorder %s97, %s98
      %p109 = scmp.eq.s32.totalorder %s21, 0
      %p110 = por %p108, %p109
      %p111 = scmp.ne.s32.totalorder %s97, %s98
      %p112 = scmp.eq.s32.totalorder %s22, 1
      %p113 = por %p111, %p112
      %p115 = scmp.ne.s32.totalorder %s98, %s114
      %p116 = scmp.eq.s32.totalorder %s22, 0
      %p117 = por %p115, %p116
      %p118 = scmp.le.s32.totalorder 1, %s16
      %p119 = scmp.lt.s32.totalorder %s16, 3
      %p120 = pnand %p118, %p119
      %p121 = pneg %p120
      // Predicated region
      $region9: #{tpu_custom_call.1} parent=5 // pred_check
        _
      $region10: #{tpu_custom_call.1} parent=5 // pred_check_branch
        %123 = sbr.rel (%p120) target = $region12
      $region11: #{tpu_custom_call.1} parent=5 // pred_region
        %s124 = ssub.s32 %s16, 1
        // Predicated region
        $region13: #{tpu_custom_call.1} parent=11 // pred_check
          %p125 = pneg %p63
        $region14: #{tpu_custom_call.1} parent=11 // pred_check_branch
          %127 = sbr.rel (%p125) target = $region16
        $region15: #{tpu_custom_call.1} parent=11 // pred_region
          %129 = vsyncadd [#allocation6], 0
          %s130 = sshll.u32 %s1, 4
          %s131 = int_to_ptr.hbm [resolvable:$true] %s130
          %s132 = sshll.u32 [#allocation5], 4
          %s133 = int_to_ptr.vmem [resolvable:$true] %s132
          %138 = dma.hbm_to_vmem [thread:$0]  %s131, 24576, %s133, [#allocation6], 256, 256, 16
        $region16: #{tpu_custom_call.1} parent=11 // pred_fallthru
          _
        // Predicated region
        $region17: #{tpu_custom_call.1} parent=11 // pred_check
          %p139 = pneg %p84
        $region18: #{tpu_custom_call.1} parent=11 // pred_check_branch
          %141 = sbr.rel (%p139) target = $region20
        $region19: #{tpu_custom_call.1} parent=11 // pred_region
          %143 = vsyncadd [#allocation6], 0
          %s145 = sshll.u32 %s2, 4
          %s146 = int_to_ptr.hbm [resolvable:$true] %s145
          %s147 = sshll.u32 [#allocation7], 4
          %s148 = int_to_ptr.vmem [resolvable:$true] %s147
          %150 = dma.hbm_to_vmem [thread:$0]  %s146, 32, %s148, [#allocation6]
        $region20: #{tpu_custom_call.1} parent=11 // pred_fallthru
          _
      $region12: #{tpu_custom_call.1} parent=5 // pred_fallthru
        _
      %p151 = scmp.lt.s32.totalorder %s16, 2
      // Predicated region
      $region21: #{tpu_custom_call.1} parent=5 // pred_check
        %p152 = pneg %p151
      $region22: #{tpu_custom_call.1} parent=5 // pred_check_branch
        %154 = sbr.rel (%p152) target = $region24
      $region23: #{tpu_custom_call.1} parent=5 // pred_region
        // Predicated region
        $region25: #{tpu_custom_call.1} parent=23 // pred_check
          %p155 = pneg %p36
        $region26: #{tpu_custom_call.1} parent=23 // pred_check_branch
          %157 = sbr.rel (%p155) target = $region28
        $region27: #{tpu_custom_call.1} parent=23 // pred_region
          %s158 = sand.u32 %s26, 1
          %s159 = scalar_lea.sflag [#allocation3], %s158
          %s160 = sand.u32 %s26, 1
          %s161 = smul.addr %s160, 1536
          %s162 = scalar_lea.vmem [#allocation2], %s161
          %s163 = smul.u32 32, %s16
          %165 = vsyncadd %s159, 0
          %s166 = smul.addr %s163, 6
          %s167 = smul.addr %s166, 8
          %s168 = scalar_lea.hbm %s0, %s167
          %s169 = sshll.u32 %s168, 4
          %s170 = int_to_ptr.hbm [resolvable:$true] %s169
          %s171 = sshll.u32 %s162, 4
          %s172 = int_to_ptr.vmem [resolvable:$true] %s171
          %177 = dma.hbm_to_vmem [thread:$0]  %s170, 24576, %s172, %s159, 768, 768, 48
        $region28: #{tpu_custom_call.1} parent=23 // pred_fallthru
          _
      $region24: #{tpu_custom_call.1} parent=5 // pred_fallthru
        _
      %p178 = scmp.le.s32.totalorder 1, %s16
      %p179 = scmp.lt.s32.totalorder %s16, 3
      %p180 = pnand %p178, %p179
      %p181 = pneg %p180
      // Predicated region
      $region29: #{tpu_custom_call.1} parent=5 // pred_check
        _
      $region30: #{tpu_custom_call.1} parent=5 // pred_check_branch
        %183 = sbr.rel (%p180) target = $region32
      $region31: #{tpu_custom_call.1} parent=5 // pred_region
        %s184 = ssub.s32 %s16, 1
        %s185 = sand.u32 %s29, 1
        %s186 = scalar_lea.sflag [#allocation3], %s185
        %s187 = sand.u32 %s29, 1
        %s188 = smul.addr %s187, 1536
        %s189 = scalar_lea.vmem [#allocation2], %s188
        // Predicated region
        $region33: #{tpu_custom_call.1} parent=31 // pred_check
          %p190 = pneg %p42
        $region34: #{tpu_custom_call.1} parent=31 // pred_check_branch
          %192 = sbr.rel (%p190) target = $region36
        $region35: #{tpu_custom_call.1} parent=31 // pred_region
          %194 = dma.done %s186, 24576
        $region36: #{tpu_custom_call.1} parent=31 // pred_fallthru
          _
        // Predicated region
        $region37: #{tpu_custom_call.1} parent=31 // pred_check
          %p195 = pneg %p63
        $region38: #{tpu_custom_call.1} parent=31 // pred_check_branch
          %197 = sbr.rel (%p195) target = $region40
        $region39: #{tpu_custom_call.1} parent=31 // pred_region
          %199 = dma.done [#allocation6], 24576
        $region40: #{tpu_custom_call.1} parent=31 // pred_fallthru
          _
        // Predicated region
        $region41: #{tpu_custom_call.1} parent=31 // pred_check
          %p200 = pneg %p84
        $region42: #{tpu_custom_call.1} parent=31 // pred_check_branch
          %202 = sbr.rel (%p200) target = $region44
        $region43: #{tpu_custom_call.1} parent=31 // pred_region
          %204 = dma.done [#allocation6], 32
        $region44: #{tpu_custom_call.1} parent=31 // pred_fallthru
          _
        %s205 = sand.u32 %s29, 1
        %s206 = scalar_lea.sflag [#allocation3], %s205
        %s207 = sand.u32 %s29, 1
        %s208 = smul.addr %s207, 1536
        %s209 = scalar_lea.vmem [#allocation2], %s208
        %p210 = pneg %p42
        %p211 = pneg %p39
        %p212 = pneg %p63
        %p213 = pneg %p60
        %p214 = pneg %p84
        %p215 = pneg %p81
        %p216 = pneg %p110
        %p217 = pneg %p107
        %s218 = sand.u32 %s97, 1
        %s219 = scalar_lea.sflag [#allocation4], %s218
        %s220 = sand.u32 %s97, 1
        %s221 = smul.addr %s220, 512
        %s222 = scalar_lea.vmem [#allocation8], %s221
        %s223 = smul.u32 32, %s21
        %s224 = smul.u32 32, %s21
        %v225 = vld [vmem:[%s189] sm:$0xff]
        %v226 = vld [vmem:[%s189 + $0x8] sm:$0xff]
        %v227 = vld [vmem:[%s189 + $0x10] sm:$0xff]
        %v228 = vld [vmem:[%s189 + $0x18] sm:$0xff]
        %v229 = vld [vmem:[%s189 + $0x20] sm:$0xff]
        %v230 = vld [vmem:[%s189 + $0x28] sm:$0xff]
        %v231 = vld [vmem:[%s189 + $0x30] sm:$0xff]
        %v232 = vld [vmem:[%s189 + $0x38] sm:$0xff]
        %v233 = vld [vmem:[%s189 + $0x40] sm:$0xff]
        %v234 = vld [vmem:[%s189 + $0x48] sm:$0xff]
        %v235 = vld [vmem:[%s189 + $0x50] sm:$0xff]
        %v236 = vld [vmem:[%s189 + $0x58] sm:$0xff]
        %v237 = vld [vmem:[%s189 + $0x60] sm:$0xff]
        %v238 = vld [vmem:[%s189 + $0x68] sm:$0xff]
        %v239 = vld [vmem:[%s189 + $0x70] sm:$0xff]
        %v240 = vld [vmem:[%s189 + $0x78] sm:$0xff]
        %v241 = vld [vmem:[%s189 + $0x80] sm:$0xff]
        %v242 = vld [vmem:[%s189 + $0x88] sm:$0xff]
        %v243 = vld [vmem:[%s189 + $0x90] sm:$0xff]
        %v244 = vld [vmem:[%s189 + $0x98] sm:$0xff]
        %v245 = vld [vmem:[%s189 + $0xa0] sm:$0xff]
        %v246 = vld [vmem:[%s189 + $0xa8] sm:$0xff]
        %v247 = vld [vmem:[%s189 + $0xb0] sm:$0xff]
        %v248 = vld [vmem:[%s189 + $0xb8] sm:$0xff]
        %v249 = vld [vmem:[%s189 + $0xc0] sm:$0xff]
        %v250 = vld [vmem:[%s189 + $0xc8] sm:$0xff]
        %v251 = vld [vmem:[%s189 + $0xd0] sm:$0xff]
        %v252 = vld [vmem:[%s189 + $0xd8] sm:$0xff]
        %v253 = vld [vmem:[%s189 + $0xe0] sm:$0xff]
        %v254 = vld [vmem:[%s189 + $0xe8] sm:$0xff]
        %v255 = vld [vmem:[%s189 + $0xf0] sm:$0xff]
        %v256 = vld [vmem:[%s189 + $0xf8] sm:$0xff]
        %v257 = vld [vmem:[%s189 + $0x100] sm:$0xff]
        %v258 = vld [vmem:[%s189 + $0x108] sm:$0xff]
        %v259 = vld [vmem:[%s189 + $0x110] sm:$0xff]
        %v260 = vld [vmem:[%s189 + $0x118] sm:$0xff]
        %v261 = vld [vmem:[%s189 + $0x120] sm:$0xff]
        %v262 = vld [vmem:[%s189 + $0x128] sm:$0xff]
        %v263 = vld [vmem:[%s189 + $0x130] sm:$0xff]
        %v264 = vld [vmem:[%s189 + $0x138] sm:$0xff]
        %v265 = vld [vmem:[%s189 + $0x140] sm:$0xff]
        %v266 = vld [vmem:[%s189 + $0x148] sm:$0xff]
        %v267 = vld [vmem:[%s189 + $0x150] sm:$0xff]
        %v268 = vld [vmem:[%s189 + $0x158] sm:$0xff]
        %v269 = vld [vmem:[%s189 + $0x160] sm:$0xff]
        %v270 = vld [vmem:[%s189 + $0x168] sm:$0xff]
        %v271 = vld [vmem:[%s189 + $0x170] sm:$0xff]
        %v272 = vld [vmem:[%s189 + $0x178] sm:$0xff]
        %v273 = vld [vmem:[%s189 + $0x180] sm:$0xff]
        %v274 = vld [vmem:[%s189 + $0x188] sm:$0xff]
        %v275 = vld [vmem:[%s189 + $0x190] sm:$0xff]
        %v276 = vld [vmem:[%s189 + $0x198] sm:$0xff]
        %v277 = vld [vmem:[%s189 + $0x1a0] sm:$0xff]
        %v278 = vld [vmem:[%s189 + $0x1a8] sm:$0xff]
        %v279 = vld [vmem:[%s189 + $0x1b0] sm:$0xff]
        %v280 = vld [vmem:[%s189 + $0x1b8] sm:$0xff]
        %v281 = vld [vmem:[%s189 + $0x1c0] sm:$0xff]
        %v282 = vld [vmem:[%s189 + $0x1c8] sm:$0xff]
        %v283 = vld [vmem:[%s189 + $0x1d0] sm:$0xff]
        %v284 = vld [vmem:[%s189 + $0x1d8] sm:$0xff]
        %v285 = vld [vmem:[%s189 + $0x1e0] sm:$0xff]
        %v286 = vld [vmem:[%s189 + $0x1e8] sm:$0xff]
        %v287 = vld [vmem:[%s189 + $0x1f0] sm:$0xff]
        %v288 = vld [vmem:[%s189 + $0x1f8] sm:$0xff]
        %v289 = vld [vmem:[%s189 + $0x200] sm:$0xff]
        %v290 = vld [vmem:[%s189 + $0x208] sm:$0xff]
        %v291 = vld [vmem:[%s189 + $0x210] sm:$0xff]
        %v292 = vld [vmem:[%s189 + $0x218] sm:$0xff]
        %v293 = vld [vmem:[%s189 + $0x220] sm:$0xff]
        %v294 = vld [vmem:[%s189 + $0x228] sm:$0xff]
        %v295 = vld [vmem:[%s189 + $0x230] sm:$0xff]
        %v296 = vld [vmem:[%s189 + $0x238] sm:$0xff]
        %v297 = vld [vmem:[%s189 + $0x240] sm:$0xff]
        %v298 = vld [vmem:[%s189 + $0x248] sm:$0xff]
        %v299 = vld [vmem:[%s189 + $0x250] sm:$0xff]
        %v300 = vld [vmem:[%s189 + $0x258] sm:$0xff]
        %v301 = vld [vmem:[%s189 + $0x260] sm:$0xff]
        %v302 = vld [vmem:[%s189 + $0x268] sm:$0xff]
        %v303 = vld [vmem:[%s189 + $0x270] sm:$0xff]
        %v304 = vld [vmem:[%s189 + $0x278] sm:$0xff]
        %v305 = vld [vmem:[%s189 + $0x280] sm:$0xff]
        %v306 = vld [vmem:[%s189 + $0x288] sm:$0xff]
        %v307 = vld [vmem:[%s189 + $0x290] sm:$0xff]
        %v308 = vld [vmem:[%s189 + $0x298] sm:$0xff]
        %v309 = vld [vmem:[%s189 + $0x2a0] sm:$0xff]
        %v310 = vld [vmem:[%s189 + $0x2a8] sm:$0xff]
        %v311 = vld [vmem:[%s189 + $0x2b0] sm:$0xff]
        %v312 = vld [vmem:[%s189 + $0x2b8] sm:$0xff]
        %v313 = vld [vmem:[%s189 + $0x2c0] sm:$0xff]
        %v314 = vld [vmem:[%s189 + $0x2c8] sm:$0xff]
        %v315 = vld [vmem:[%s189 + $0x2d0] sm:$0xff]
        %v316 = vld [vmem:[%s189 + $0x2d8] sm:$0xff]
        %v317 = vld [vmem:[%s189 + $0x2e0] sm:$0xff]
        %v318 = vld [vmem:[%s189 + $0x2e8] sm:$0xff]
        %v319 = vld [vmem:[%s189 + $0x2f0] sm:$0xff]
        %v320 = vld [vmem:[%s189 + $0x2f8] sm:$0xff]
        %v321 = vld [vmem:[%s189 + $0x300] sm:$0xff]
        %v322 = vld [vmem:[%s189 + $0x308] sm:$0xff]
        %v323 = vld [vmem:[%s189 + $0x310] sm:$0xff]
        %v324 = vld [vmem:[%s189 + $0x318] sm:$0xff]
        %v325 = vld [vmem:[%s189 + $0x320] sm:$0xff]
        %v326 = vld [vmem:[%s189 + $0x328] sm:$0xff]
        %v327 = vld [vmem:[%s189 + $0x330] sm:$0xff]
        %v328 = vld [vmem:[%s189 + $0x338] sm:$0xff]
        %v329 = vld [vmem:[%s189 + $0x340] sm:$0xff]
        %v330 = vld [vmem:[%s189 + $0x348] sm:$0xff]
        %v331 = vld [vmem:[%s189 + $0x350] sm:$0xff]
        %v332 = vld [vmem:[%s189 + $0x358] sm:$0xff]
        %v333 = vld [vmem:[%s189 + $0x360] sm:$0xff]
        %v334 = vld [vmem:[%s189 + $0x368] sm:$0xff]
        %v335 = vld [vmem:[%s189 + $0x370] sm:$0xff]
        %v336 = vld [vmem:[%s189 + $0x378] sm:$0xff]
        %v337 = vld [vmem:[%s189 + $0x380] sm:$0xff]
        %v338 = vld [vmem:[%s189 + $0x388] sm:$0xff]
        %v339 = vld [vmem:[%s189 + $0x390] sm:$0xff]
        %v340 = vld [vmem:[%s189 + $0x398] sm:$0xff]
        %v341 = vld [vmem:[%s189 + $0x3a0] sm:$0xff]
        %v342 = vld [vmem:[%s189 + $0x3a8] sm:$0xff]
        %v343 = vld [vmem:[%s189 + $0x3b0] sm:$0xff]
        %v344 = vld [vmem:[%s189 + $0x3b8] sm:$0xff]
        %v345 = vld [vmem:[%s189 + $0x3c0] sm:$0xff]
        %v346 = vld [vmem:[%s189 + $0x3c8] sm:$0xff]
        %v347 = vld [vmem:[%s189 + $0x3d0] sm:$0xff]
        %v348 = vld [vmem:[%s189 + $0x3d8] sm:$0xff]
        %v349 = vld [vmem:[%s189 + $0x3e0] sm:$0xff]
        %v350 = vld [vmem:[%s189 + $0x3e8] sm:$0xff]
        %v351 = vld [vmem:[%s189 + $0x3f0] sm:$0xff]
        %v352 = vld [vmem:[%s189 + $0x3f8] sm:$0xff]
        %v353 = vld [vmem:[%s189 + $0x400] sm:$0xff]
        %v354 = vld [vmem:[%s189 + $0x408] sm:$0xff]
        %v355 = vld [vmem:[%s189 + $0x410] sm:$0xff]
        %v356 = vld [vmem:[%s189 + $0x418] sm:$0xff]
        %v357 = vld [vmem:[%s189 + $0x420] sm:$0xff]
        %v358 = vld [vmem:[%s189 + $0x428] sm:$0xff]
        %v359 = vld [vmem:[%s189 + $0x430] sm:$0xff]
        %v360 = vld [vmem:[%s189 + $0x438] sm:$0xff]
        %v361 = vld [vmem:[%s189 + $0x440] sm:$0xff]
        %v362 = vld [vmem:[%s189 + $0x448] sm:$0xff]
        %v363 = vld [vmem:[%s189 + $0x450] sm:$0xff]
        %v364 = vld [vmem:[%s189 + $0x458] sm:$0xff]
        %v365 = vld [vmem:[%s189 + $0x460] sm:$0xff]
        %v366 = vld [vmem:[%s189 + $0x468] sm:$0xff]
        %v367 = vld [vmem:[%s189 + $0x470] sm:$0xff]
        %v368 = vld [vmem:[%s189 + $0x478] sm:$0xff]
        %v369 = vld [vmem:[%s189 + $0x480] sm:$0xff]
        %v370 = vld [vmem:[%s189 + $0x488] sm:$0xff]
        %v371 = vld [vmem:[%s189 + $0x490] sm:$0xff]
        %v372 = vld [vmem:[%s189 + $0x498] sm:$0xff]
        %v373 = vld [vmem:[%s189 + $0x4a0] sm:$0xff]
        %v374 = vld [vmem:[%s189 + $0x4a8] sm:$0xff]
        %v375 = vld [vmem:[%s189 + $0x4b0] sm:$0xff]
        %v376 = vld [vmem:[%s189 + $0x4b8] sm:$0xff]
        %v377 = vld [vmem:[%s189 + $0x4c0] sm:$0xff]
        %v378 = vld [vmem:[%s189 + $0x4c8] sm:$0xff]
        %v379 = vld [vmem:[%s189 + $0x4d0] sm:$0xff]
        %v380 = vld [vmem:[%s189 + $0x4d8] sm:$0xff]
        %v381 = vld [vmem:[%s189 + $0x4e0] sm:$0xff]
        %v382 = vld [vmem:[%s189 + $0x4e8] sm:$0xff]
        %v383 = vld [vmem:[%s189 + $0x4f0] sm:$0xff]
        %v384 = vld [vmem:[%s189 + $0x4f8] sm:$0xff]
        %v385 = vld [vmem:[%s189 + $0x500] sm:$0xff]
        %v386 = vld [vmem:[%s189 + $0x508] sm:$0xff]
        %v387 = vld [vmem:[%s189 + $0x510] sm:$0xff]
        %v388 = vld [vmem:[%s189 + $0x518] sm:$0xff]
        %v389 = vld [vmem:[%s189 + $0x520] sm:$0xff]
        %v390 = vld [vmem:[%s189 + $0x528] sm:$0xff]
        %v391 = vld [vmem:[%s189 + $0x530] sm:$0xff]
        %v392 = vld [vmem:[%s189 + $0x538] sm:$0xff]
        %v393 = vld [vmem:[%s189 + $0x540] sm:$0xff]
        %v394 = vld [vmem:[%s189 + $0x548] sm:$0xff]
        %v395 = vld [vmem:[%s189 + $0x550] sm:$0xff]
        %v396 = vld [vmem:[%s189 + $0x558] sm:$0xff]
        %v397 = vld [vmem:[%s189 + $0x560] sm:$0xff]
        %v398 = vld [vmem:[%s189 + $0x568] sm:$0xff]
        %v399 = vld [vmem:[%s189 + $0x570] sm:$0xff]
        %v400 = vld [vmem:[%s189 + $0x578] sm:$0xff]
        %v401 = vld [vmem:[%s189 + $0x580] sm:$0xff]
        %v402 = vld [vmem:[%s189 + $0x588] sm:$0xff]
        %v403 = vld [vmem:[%s189 + $0x590] sm:$0xff]
        %v404 = vld [vmem:[%s189 + $0x598] sm:$0xff]
        %v405 = vld [vmem:[%s189 + $0x5a0] sm:$0xff]
        %v406 = vld [vmem:[%s189 + $0x5a8] sm:$0xff]
        %v407 = vld [vmem:[%s189 + $0x5b0] sm:$0xff]
        %v408 = vld [vmem:[%s189 + $0x5b8] sm:$0xff]
        %v409 = vld [vmem:[%s189 + $0x5c0] sm:$0xff]
        %v410 = vld [vmem:[%s189 + $0x5c8] sm:$0xff]
        %v411 = vld [vmem:[%s189 + $0x5d0] sm:$0xff]
        %v412 = vld [vmem:[%s189 + $0x5d8] sm:$0xff]
        %v413 = vld [vmem:[%s189 + $0x5e0] sm:$0xff]
        %v414 = vld [vmem:[%s189 + $0x5e8] sm:$0xff]
        %v415 = vld [vmem:[%s189 + $0x5f0] sm:$0xff]
        %v416 = vld [vmem:[%s189 + $0x5f8] sm:$0xff]
        %v417 = vld [vmem:[#allocation5] sm:$0xff]
        %v418 = vld [vmem:[#allocation5 + $0x8] sm:$0xff]
        %v419 = vld [vmem:[#allocation5 + $0x10] sm:$0xff]
        %v420 = vld [vmem:[#allocation5 + $0x18] sm:$0xff]
        %v421 = vld [vmem:[#allocation5 + $0x20] sm:$0xff]
        %v422 = vld [vmem:[#allocation5 + $0x28] sm:$0xff]
        %v423 = vld [vmem:[#allocation5 + $0x30] sm:$0xff]
        %v424 = vld [vmem:[#allocation5 + $0x38] sm:$0xff]
        %v425 = vld [vmem:[#allocation5 + $0x40] sm:$0xff]
        %v426 = vld [vmem:[#allocation5 + $0x48] sm:$0xff]
        %v427 = vld [vmem:[#allocation5 + $0x50] sm:$0xff]
        %v428 = vld [vmem:[#allocation5 + $0x58] sm:$0xff]
        %v429 = vld [vmem:[#allocation5 + $0x60] sm:$0xff]
        %v430 = vld [vmem:[#allocation5 + $0x68] sm:$0xff]
        %v431 = vld [vmem:[#allocation5 + $0x70] sm:$0xff]
        %v432 = vld [vmem:[#allocation5 + $0x78] sm:$0xff]
        %v433 = vld [vmem:[#allocation5 + $0x80] sm:$0xff]
        %v434 = vld [vmem:[#allocation5 + $0x88] sm:$0xff]
        %v435 = vld [vmem:[#allocation5 + $0x90] sm:$0xff]
        %v436 = vld [vmem:[#allocation5 + $0x98] sm:$0xff]
        %v437 = vld [vmem:[#allocation5 + $0xa0] sm:$0xff]
        %v438 = vld [vmem:[#allocation5 + $0xa8] sm:$0xff]
        %v439 = vld [vmem:[#allocation5 + $0xb0] sm:$0xff]
        %v440 = vld [vmem:[#allocation5 + $0xb8] sm:$0xff]
        %v441 = vld [vmem:[#allocation5 + $0xc0] sm:$0xff]
        %v442 = vld [vmem:[#allocation5 + $0xc8] sm:$0xff]
        %v443 = vld [vmem:[#allocation5 + $0xd0] sm:$0xff]
        %v444 = vld [vmem:[#allocation5 + $0xd8] sm:$0xff]
        %v445 = vld [vmem:[#allocation5 + $0xe0] sm:$0xff]
        %v446 = vld [vmem:[#allocation5 + $0xe8] sm:$0xff]
        %v447 = vld [vmem:[#allocation5 + $0xf0] sm:$0xff]
        %v448 = vld [vmem:[#allocation5 + $0xf8] sm:$0xff]
        %v449 = vld [vmem:[#allocation5 + $0x100] sm:$0xff]
        %v450 = vld [vmem:[#allocation5 + $0x108] sm:$0xff]
        %v451 = vld [vmem:[#allocation5 + $0x110] sm:$0xff]
        %v452 = vld [vmem:[#allocation5 + $0x118] sm:$0xff]
        %v453 = vld [vmem:[#allocation5 + $0x120] sm:$0xff]
        %v454 = vld [vmem:[#allocation5 + $0x128] sm:$0xff]
        %v455 = vld [vmem:[#allocation5 + $0x130] sm:$0xff]
        %v456 = vld [vmem:[#allocation5 + $0x138] sm:$0xff]
        %v457 = vld [vmem:[#allocation5 + $0x140] sm:$0xff]
        %v458 = vld [vmem:[#allocation5 + $0x148] sm:$0xff]
        %v459 = vld [vmem:[#allocation5 + $0x150] sm:$0xff]
        %v460 = vld [vmem:[#allocation5 + $0x158] sm:$0xff]
        %v461 = vld [vmem:[#allocation5 + $0x160] sm:$0xff]
        %v462 = vld [vmem:[#allocation5 + $0x168] sm:$0xff]
        %v463 = vld [vmem:[#allocation5 + $0x170] sm:$0xff]
        %v464 = vld [vmem:[#allocation5 + $0x178] sm:$0xff]
        %v465 = vld [vmem:[#allocation5 + $0x180] sm:$0xff]
        %v466 = vld [vmem:[#allocation5 + $0x188] sm:$0xff]
        %v467 = vld [vmem:[#allocation5 + $0x190] sm:$0xff]
        %v468 = vld [vmem:[#allocation5 + $0x198] sm:$0xff]
        %v469 = vld [vmem:[#allocation5 + $0x1a0] sm:$0xff]
        %v470 = vld [vmem:[#allocation5 + $0x1a8] sm:$0xff]
        %v471 = vld [vmem:[#allocation5 + $0x1b0] sm:$0xff]
        %v472 = vld [vmem:[#allocation5 + $0x1b8] sm:$0xff]
        %v473 = vld [vmem:[#allocation5 + $0x1c0] sm:$0xff]
        %v474 = vld [vmem:[#allocation5 + $0x1c8] sm:$0xff]
        %v475 = vld [vmem:[#allocation5 + $0x1d0] sm:$0xff]
        %v476 = vld [vmem:[#allocation5 + $0x1d8] sm:$0xff]
        %v477 = vld [vmem:[#allocation5 + $0x1e0] sm:$0xff]
        %v478 = vld [vmem:[#allocation5 + $0x1e8] sm:$0xff]
        %v479 = vld [vmem:[#allocation5 + $0x1f0] sm:$0xff]
        %v480 = vld [vmem:[#allocation5 + $0x1f8] sm:$0xff]
        %v481 = vld [vmem:[#allocation5 + $0x200] sm:$0xff]
        %v482 = vld [vmem:[#allocation5 + $0x208] sm:$0xff]
        %v483 = vld [vmem:[#allocation5 + $0x210] sm:$0xff]
        %v484 = vld [vmem:[#allocation5 + $0x218] sm:$0xff]
        %v485 = vld [vmem:[#allocation5 + $0x220] sm:$0xff]
        %v486 = vld [vmem:[#allocation5 + $0x228] sm:$0xff]
        %v487 = vld [vmem:[#allocation5 + $0x230] sm:$0xff]
        %v488 = vld [vmem:[#allocation5 + $0x238] sm:$0xff]
        %v489 = vld [vmem:[#allocation5 + $0x240] sm:$0xff]
        %v490 = vld [vmem:[#allocation5 + $0x248] sm:$0xff]
        %v491 = vld [vmem:[#allocation5 + $0x250] sm:$0xff]
        %v492 = vld [vmem:[#allocation5 + $0x258] sm:$0xff]
        %v493 = vld [vmem:[#allocation5 + $0x260] sm:$0xff]
        %v494 = vld [vmem:[#allocation5 + $0x268] sm:$0xff]
        %v495 = vld [vmem:[#allocation5 + $0x270] sm:$0xff]
        %v496 = vld [vmem:[#allocation5 + $0x278] sm:$0xff]
        %v497 = vld [vmem:[#allocation5 + $0x280] sm:$0xff]
        %v498 = vld [vmem:[#allocation5 + $0x288] sm:$0xff]
        %v499 = vld [vmem:[#allocation5 + $0x290] sm:$0xff]
        %v500 = vld [vmem:[#allocation5 + $0x298] sm:$0xff]
        %v501 = vld [vmem:[#allocation5 + $0x2a0] sm:$0xff]
        %v502 = vld [vmem:[#allocation5 + $0x2a8] sm:$0xff]
        %v503 = vld [vmem:[#allocation5 + $0x2b0] sm:$0xff]
        %v504 = vld [vmem:[#allocation5 + $0x2b8] sm:$0xff]
        %v505 = vld [vmem:[#allocation5 + $0x2c0] sm:$0xff]
        %v506 = vld [vmem:[#allocation5 + $0x2c8] sm:$0xff]
        %v507 = vld [vmem:[#allocation5 + $0x2d0] sm:$0xff]
        %v508 = vld [vmem:[#allocation5 + $0x2d8] sm:$0xff]
        %v509 = vld [vmem:[#allocation5 + $0x2e0] sm:$0xff]
        %v510 = vld [vmem:[#allocation5 + $0x2e8] sm:$0xff]
        %v511 = vld [vmem:[#allocation5 + $0x2f0] sm:$0xff]
        %v512 = vld [vmem:[#allocation5 + $0x2f8] sm:$0xff]
        %v513 = vld [vmem:[#allocation5 + $0x300] sm:$0xff]
        %v514 = vld [vmem:[#allocation5 + $0x308] sm:$0xff]
        %v515 = vld [vmem:[#allocation5 + $0x310] sm:$0xff]
        %v516 = vld [vmem:[#allocation5 + $0x318] sm:$0xff]
        %v517 = vld [vmem:[#allocation5 + $0x320] sm:$0xff]
        %v518 = vld [vmem:[#allocation5 + $0x328] sm:$0xff]
        %v519 = vld [vmem:[#allocation5 + $0x330] sm:$0xff]
        %v520 = vld [vmem:[#allocation5 + $0x338] sm:$0xff]
        %v521 = vld [vmem:[#allocation5 + $0x340] sm:$0xff]
        %v522 = vld [vmem:[#allocation5 + $0x348] sm:$0xff]
        %v523 = vld [vmem:[#allocation5 + $0x350] sm:$0xff]
        %v524 = vld [vmem:[#allocation5 + $0x358] sm:$0xff]
        %v525 = vld [vmem:[#allocation5 + $0x360] sm:$0xff]
        %v526 = vld [vmem:[#allocation5 + $0x368] sm:$0xff]
        %v527 = vld [vmem:[#allocation5 + $0x370] sm:$0xff]
        %v528 = vld [vmem:[#allocation5 + $0x378] sm:$0xff]
        %v529 = vld [vmem:[#allocation5 + $0x380] sm:$0xff]
        %v530 = vld [vmem:[#allocation5 + $0x388] sm:$0xff]
        %v531 = vld [vmem:[#allocation5 + $0x390] sm:$0xff]
        %v532 = vld [vmem:[#allocation5 + $0x398] sm:$0xff]
        %v533 = vld [vmem:[#allocation5 + $0x3a0] sm:$0xff]
        %v534 = vld [vmem:[#allocation5 + $0x3a8] sm:$0xff]
        %v535 = vld [vmem:[#allocation5 + $0x3b0] sm:$0xff]
        %v536 = vld [vmem:[#allocation5 + $0x3b8] sm:$0xff]
        %v537 = vld [vmem:[#allocation5 + $0x3c0] sm:$0xff]
        %v538 = vld [vmem:[#allocation5 + $0x3c8] sm:$0xff]
        %v539 = vld [vmem:[#allocation5 + $0x3d0] sm:$0xff]
        %v540 = vld [vmem:[#allocation5 + $0x3d8] sm:$0xff]
        %v541 = vld [vmem:[#allocation5 + $0x3e0] sm:$0xff]
        %v542 = vld [vmem:[#allocation5 + $0x3e8] sm:$0xff]
        %v543 = vld [vmem:[#allocation5 + $0x3f0] sm:$0xff]
        %v544 = vld [vmem:[#allocation5 + $0x3f8] sm:$0xff]
        %v545 = vld [vmem:[#allocation5 + $0x400] sm:$0xff]
        %v546 = vld [vmem:[#allocation5 + $0x408] sm:$0xff]
        %v547 = vld [vmem:[#allocation5 + $0x410] sm:$0xff]
        %v548 = vld [vmem:[#allocation5 + $0x418] sm:$0xff]
        %v549 = vld [vmem:[#allocation5 + $0x420] sm:$0xff]
        %v550 = vld [vmem:[#allocation5 + $0x428] sm:$0xff]
        %v551 = vld [vmem:[#allocation5 + $0x430] sm:$0xff]
        %v552 = vld [vmem:[#allocation5 + $0x438] sm:$0xff]
        %v553 = vld [vmem:[#allocation5 + $0x440] sm:$0xff]
        %v554 = vld [vmem:[#allocation5 + $0x448] sm:$0xff]
        %v555 = vld [vmem:[#allocation5 + $0x450] sm:$0xff]
        %v556 = vld [vmem:[#allocation5 + $0x458] sm:$0xff]
        %v557 = vld [vmem:[#allocation5 + $0x460] sm:$0xff]
        %v558 = vld [vmem:[#allocation5 + $0x468] sm:$0xff]
        %v559 = vld [vmem:[#allocation5 + $0x470] sm:$0xff]
        %v560 = vld [vmem:[#allocation5 + $0x478] sm:$0xff]
        %v561 = vld [vmem:[#allocation5 + $0x480] sm:$0xff]
        %v562 = vld [vmem:[#allocation5 + $0x488] sm:$0xff]
        %v563 = vld [vmem:[#allocation5 + $0x490] sm:$0xff]
        %v564 = vld [vmem:[#allocation5 + $0x498] sm:$0xff]
        %v565 = vld [vmem:[#allocation5 + $0x4a0] sm:$0xff]
        %v566 = vld [vmem:[#allocation5 + $0x4a8] sm:$0xff]
        %v567 = vld [vmem:[#allocation5 + $0x4b0] sm:$0xff]
        %v568 = vld [vmem:[#allocation5 + $0x4b8] sm:$0xff]
        %v569 = vld [vmem:[#allocation5 + $0x4c0] sm:$0xff]
        %v570 = vld [vmem:[#allocation5 + $0x4c8] sm:$0xff]
        %v571 = vld [vmem:[#allocation5 + $0x4d0] sm:$0xff]
        %v572 = vld [vmem:[#allocation5 + $0x4d8] sm:$0xff]
        %v573 = vld [vmem:[#allocation5 + $0x4e0] sm:$0xff]
        %v574 = vld [vmem:[#allocation5 + $0x4e8] sm:$0xff]
        %v575 = vld [vmem:[#allocation5 + $0x4f0] sm:$0xff]
        %v576 = vld [vmem:[#allocation5 + $0x4f8] sm:$0xff]
        %v577 = vld [vmem:[#allocation5 + $0x500] sm:$0xff]
        %v578 = vld [vmem:[#allocation5 + $0x508] sm:$0xff]
        %v579 = vld [vmem:[#allocation5 + $0x510] sm:$0xff]
        %v580 = vld [vmem:[#allocation5 + $0x518] sm:$0xff]
        %v581 = vld [vmem:[#allocation5 + $0x520] sm:$0xff]
        %v582 = vld [vmem:[#allocation5 + $0x528] sm:$0xff]
        %v583 = vld [vmem:[#allocation5 + $0x530] sm:$0xff]
        %v584 = vld [vmem:[#allocation5 + $0x538] sm:$0xff]
        %v585 = vld [vmem:[#allocation5 + $0x540] sm:$0xff]
        %v586 = vld [vmem:[#allocation5 + $0x548] sm:$0xff]
        %v587 = vld [vmem:[#allocation5 + $0x550] sm:$0xff]
        %v588 = vld [vmem:[#allocation5 + $0x558] sm:$0xff]
        %v589 = vld [vmem:[#allocation5 + $0x560] sm:$0xff]
        %v590 = vld [vmem:[#allocation5 + $0x568] sm:$0xff]
        %v591 = vld [vmem:[#allocation5 + $0x570] sm:$0xff]
        %v592 = vld [vmem:[#allocation5 + $0x578] sm:$0xff]
        %v593 = vld [vmem:[#allocation5 + $0x580] sm:$0xff]
        %v594 = vld [vmem:[#allocation5 + $0x588] sm:$0xff]
        %v595 = vld [vmem:[#allocation5 + $0x590] sm:$0xff]
        %v596 = vld [vmem:[#allocation5 + $0x598] sm:$0xff]
        %v597 = vld [vmem:[#allocation5 + $0x5a0] sm:$0xff]
        %v598 = vld [vmem:[#allocation5 + $0x5a8] sm:$0xff]
        %v599 = vld [vmem:[#allocation5 + $0x5b0] sm:$0xff]
        %v600 = vld [vmem:[#allocation5 + $0x5b8] sm:$0xff]
        %v601 = vld [vmem:[#allocation5 + $0x5c0] sm:$0xff]
        %v602 = vld [vmem:[#allocation5 + $0x5c8] sm:$0xff]
        %v603 = vld [vmem:[#allocation5 + $0x5d0] sm:$0xff]
        %v604 = vld [vmem:[#allocation5 + $0x5d8] sm:$0xff]
        %v605 = vld [vmem:[#allocation5 + $0x5e0] sm:$0xff]
        %v606 = vld [vmem:[#allocation5 + $0x5e8] sm:$0xff]
        %v607 = vld [vmem:[#allocation5 + $0x5f0] sm:$0xff]
        %v608 = vld [vmem:[#allocation5 + $0x5f8] sm:$0xff]
        %v609 = vld [vmem:[#allocation7] sm:$0x3]
        %v611 = vperm.slane %v609, 0
        %v612 = vperm.slane %v609, 1
        %615 = vmatpush.msra.mxu0 %v447
        %616 = vmatpush.msra.mxu0 %v445
        %617 = vmatpush.msra.mxu0 %v443
        %618 = vmatpush.msra.mxu0 %v441
        %619 = vmatpush.msra.mxu0 %v439
        %620 = vmatpush.msra.mxu0 %v437
        %621 = vmatpush.msra.mxu0 %v435
        %622 = vmatpush.msra.mxu0 %v433
        %623 = vmatpush.msra.mxu0 %v431
        %624 = vmatpush.msra.mxu0 %v429
        %625 = vmatpush.msra.mxu0 %v427
        %626 = vmatpush.msra.mxu0 %v425
        %627 = vmatpush.msra.mxu0 %v423
        %628 = vmatpush.msra.mxu0 %v421
        %629 = vmatpush.msra.mxu0 %v419
        %630 = vmatpush.msra.mxu0 %v417
        %631 = vmatmul.f32.gmra.mxu0 %v225
        %v632 = vpop.f32.mrf.mxu0
        %v633 = vadd.f32 %v611, %v632
        %634 = vmatmul.f32.gmra.mxu0 %v231
        %v635 = vpop.f32.mrf.mxu0
        %v636 = vadd.f32 %v611, %v635
        %637 = vmatmul.f32.gmra.mxu0 %v237
        %v638 = vpop.f32.mrf.mxu0
        %v639 = vadd.f32 %v611, %v638
        %640 = vmatmul.f32.gmra.mxu0 %v243
        %v641 = vpop.f32.mrf.mxu0
        %v642 = vadd.f32 %v611, %v641
        %643 = vmatmul.f32.gmra.mxu0 %v249
        %v644 = vpop.f32.mrf.mxu0
        %v645 = vadd.f32 %v611, %v644
        %646 = vmatmul.f32.gmra.mxu0 %v255
        %v647 = vpop.f32.mrf.mxu0
        %v648 = vadd.f32 %v611, %v647
        %649 = vmatmul.f32.gmra.mxu0 %v261
        %v650 = vpop.f32.mrf.mxu0
        %v651 = vadd.f32 %v611, %v650
        %652 = vmatmul.f32.gmra.mxu0 %v267
        %v653 = vpop.f32.mrf.mxu0
        %v654 = vadd.f32 %v611, %v653
        %655 = vmatmul.f32.gmra.mxu0 %v273
        %v656 = vpop.f32.mrf.mxu0
        %v657 = vadd.f32 %v611, %v656
        %658 = vmatmul.f32.gmra.mxu0 %v279
        %v659 = vpop.f32.mrf.mxu0
        %v660 = vadd.f32 %v611, %v659
        %661 = vmatmul.f32.gmra.mxu0 %v285
        %v662 = vpop.f32.mrf.mxu0
        %v663 = vadd.f32 %v611, %v662
        %664 = vmatmul.f32.gmra.mxu0 %v291
        %v665 = vpop.f32.mrf.mxu0
        %v666 = vadd.f32 %v611, %v665
        %667 = vmatmul.f32.gmra.mxu0 %v297
        %v668 = vpop.f32.mrf.mxu0
        %v669 = vadd.f32 %v611, %v668
        %670 = vmatmul.f32.gmra.mxu0 %v303
        %v671 = vpop.f32.mrf.mxu0
        %v672 = vadd.f32 %v611, %v671
        %673 = vmatmul.f32.gmra.mxu0 %v309
        %v674 = vpop.f32.mrf.mxu0
        %v675 = vadd.f32 %v611, %v674
        %676 = vmatmul.f32.gmra.mxu0 %v315
        %v677 = vpop.f32.mrf.mxu0
        %v678 = vadd.f32 %v611, %v677
        %679 = vmatmul.f32.gmra.mxu0 %v321
        %v680 = vpop.f32.mrf.mxu0
        %v681 = vadd.f32 %v611, %v680
        %682 = vmatmul.f32.gmra.mxu0 %v327
        %v683 = vpop.f32.mrf.mxu0
        %v684 = vadd.f32 %v611, %v683
        %685 = vmatmul.f32.gmra.mxu0 %v333
        %v686 = vpop.f32.mrf.mxu0
        %v687 = vadd.f32 %v611, %v686
        %688 = vmatmul.f32.gmra.mxu0 %v339
        %v689 = vpop.f32.mrf.mxu0
        %v690 = vadd.f32 %v611, %v689
        %691 = vmatmul.f32.gmra.mxu0 %v345
        %v692 = vpop.f32.mrf.mxu0
        %v693 = vadd.f32 %v611, %v692
        %694 = vmatmul.f32.gmra.mxu0 %v351
        %v695 = vpop.f32.mrf.mxu0
        %v696 = vadd.f32 %v611, %v695
        %697 = vmatmul.f32.gmra.mxu0 %v357
        %v698 = vpop.f32.mrf.mxu0
        %v699 = vadd.f32 %v611, %v698
        %700 = vmatmul.f32.gmra.mxu0 %v363
        %v701 = vpop.f32.mrf.mxu0
        %v702 = vadd.f32 %v611, %v701
        %703 = vmatmul.f32.gmra.mxu0 %v369
        %v704 = vpop.f32.mrf.mxu0
        %v705 = vadd.f32 %v611, %v704
        %706 = vmatmul.f32.gmra.mxu0 %v375
        %v707 = vpop.f32.mrf.mxu0
        %v708 = vadd.f32 %v611, %v707
        %709 = vmatmul.f32.gmra.mxu0 %v381
        %v710 = vpop.f32.mrf.mxu0
        %v711 = vadd.f32 %v611, %v710
        %712 = vmatmul.f32.gmra.mxu0 %v387
        %v713 = vpop.f32.mrf.mxu0
        %v714 = vadd.f32 %v611, %v713
        %715 = vmatmul.f32.gmra.mxu0 %v393
        %v716 = vpop.f32.mrf.mxu0
        %v717 = vadd.f32 %v611, %v716
        %718 = vmatmul.f32.gmra.mxu0 %v399
        %v719 = vpop.f32.mrf.mxu0
        %v720 = vadd.f32 %v611, %v719
        %721 = vmatmul.f32.gmra.mxu0 %v405
        %v722 = vpop.f32.mrf.mxu0
        %v723 = vadd.f32 %v611, %v722
        %724 = vmatmul.f32.gmra.mxu0 %v411
        %v725 = vpop.f32.mrf.mxu0
        %v726 = vadd.f32 %v611, %v725
        %727 = vdwg.mxu0
        %728 = vmatpush.msra.mxu0 %v479
        %729 = vmatpush.msra.mxu0 %v477
        %730 = vmatpush.msra.mxu0 %v475
        %731 = vmatpush.msra.mxu0 %v473
        %732 = vmatpush.msra.mxu0 %v471
        %733 = vmatpush.msra.mxu0 %v469
        %734 = vmatpush.msra.mxu0 %v467
        %735 = vmatpush.msra.mxu0 %v465
        %736 = vmatpush.msra.mxu0 %v463
        %737 = vmatpush.msra.mxu0 %v461
        %738 = vmatpush.msra.mxu0 %v459
        %739 = vmatpush.msra.mxu0 %v457
        %740 = vmatpush.msra.mxu0 %v455
        %741 = vmatpush.msra.mxu0 %v453
        %742 = vmatpush.msra.mxu0 %v451
        %743 = vmatpush.msra.mxu0 %v449
        %744 = vmatmul.f32.gmra.mxu0 %v226
        %v745 = vpop.f32.mrf.mxu0
        %v746 = vadd.f32 %v633, %v745
        %747 = vmatmul.f32.gmra.mxu0 %v232
        %v748 = vpop.f32.mrf.mxu0
        %v749 = vadd.f32 %v636, %v748
        %750 = vmatmul.f32.gmra.mxu0 %v238
        %v751 = vpop.f32.mrf.mxu0
        %v752 = vadd.f32 %v639, %v751
        %753 = vmatmul.f32.gmra.mxu0 %v244
        %v754 = vpop.f32.mrf.mxu0
        %v755 = vadd.f32 %v642, %v754
        %756 = vmatmul.f32.gmra.mxu0 %v250
        %v757 = vpop.f32.mrf.mxu0
        %v758 = vadd.f32 %v645, %v757
        %759 = vmatmul.f32.gmra.mxu0 %v256
        %v760 = vpop.f32.mrf.mxu0
        %v761 = vadd.f32 %v648, %v760
        %762 = vmatmul.f32.gmra.mxu0 %v262
        %v763 = vpop.f32.mrf.mxu0
        %v764 = vadd.f32 %v651, %v763
        %765 = vmatmul.f32.gmra.mxu0 %v268
        %v766 = vpop.f32.mrf.mxu0
        %v767 = vadd.f32 %v654, %v766
        %768 = vmatmul.f32.gmra.mxu0 %v274
        %v769 = vpop.f32.mrf.mxu0
        %v770 = vadd.f32 %v657, %v769
        %771 = vmatmul.f32.gmra.mxu0 %v280
        %v772 = vpop.f32.mrf.mxu0
        %v773 = vadd.f32 %v660, %v772
        %774 = vmatmul.f32.gmra.mxu0 %v286
        %v775 = vpop.f32.mrf.mxu0
        %v776 = vadd.f32 %v663, %v775
        %777 = vmatmul.f32.gmra.mxu0 %v292
        %v778 = vpop.f32.mrf.mxu0
        %v779 = vadd.f32 %v666, %v778
        %780 = vmatmul.f32.gmra.mxu0 %v298
        %v781 = vpop.f32.mrf.mxu0
        %v782 = vadd.f32 %v669, %v781
        %783 = vmatmul.f32.gmra.mxu0 %v304
        %v784 = vpop.f32.mrf.mxu0
        %v785 = vadd.f32 %v672, %v784
        %786 = vmatmul.f32.gmra.mxu0 %v310
        %v787 = vpop.f32.mrf.mxu0
        %v788 = vadd.f32 %v675, %v787
        %789 = vmatmul.f32.gmra.mxu0 %v316
        %v790 = vpop.f32.mrf.mxu0
        %v791 = vadd.f32 %v678, %v790
        %792 = vmatmul.f32.gmra.mxu0 %v322
        %v793 = vpop.f32.mrf.mxu0
        %v794 = vadd.f32 %v681, %v793
        %795 = vmatmul.f32.gmra.mxu0 %v328
        %v796 = vpop.f32.mrf.mxu0
        %v797 = vadd.f32 %v684, %v796
        %798 = vmatmul.f32.gmra.mxu0 %v334
        %v799 = vpop.f32.mrf.mxu0
        %v800 = vadd.f32 %v687, %v799
        %801 = vmatmul.f32.gmra.mxu0 %v340
        %v802 = vpop.f32.mrf.mxu0
        %v803 = vadd.f32 %v690, %v802
        %804 = vmatmul.f32.gmra.mxu0 %v346
        %v805 = vpop.f32.mrf.mxu0
        %v806 = vadd.f32 %v693, %v805
        %807 = vmatmul.f32.gmra.mxu0 %v352
        %v808 = vpop.f32.mrf.mxu0
        %v809 = vadd.f32 %v696, %v808
        %810 = vmatmul.f32.gmra.mxu0 %v358
        %v811 = vpop.f32.mrf.mxu0
        %v812 = vadd.f32 %v699, %v811
        %813 = vmatmul.f32.gmra.mxu0 %v364
        %v814 = vpop.f32.mrf.mxu0
        %v815 = vadd.f32 %v702, %v814
        %816 = vmatmul.f32.gmra.mxu0 %v370
        %v817 = vpop.f32.mrf.mxu0
        %v818 = vadd.f32 %v705, %v817
        %819 = vmatmul.f32.gmra.mxu0 %v376
        %v820 = vpop.f32.mrf.mxu0
        %v821 = vadd.f32 %v708, %v820
        %822 = vmatmul.f32.gmra.mxu0 %v382
        %v823 = vpop.f32.mrf.mxu0
        %v824 = vadd.f32 %v711, %v823
        %825 = vmatmul.f32.gmra.mxu0 %v388
        %v826 = vpop.f32.mrf.mxu0
        %v827 = vadd.f32 %v714, %v826
        %828 = vmatmul.f32.gmra.mxu0 %v394
        %v829 = vpop.f32.mrf.mxu0
        %v830 = vadd.f32 %v717, %v829
        %831 = vmatmul.f32.gmra.mxu0 %v400
        %v832 = vpop.f32.mrf.mxu0
        %v833 = vadd.f32 %v720, %v832
        %834 = vmatmul.f32.gmra.mxu0 %v406
        %v835 = vpop.f32.mrf.mxu0
        %v836 = vadd.f32 %v723, %v835
        %837 = vmatmul.f32.gmra.mxu0 %v412
        %v838 = vpop.f32.mrf.mxu0
        %v839 = vadd.f32 %v726, %v838
        %840 = vdwg.mxu0
        %841 = vmatpush.msra.mxu0 %v511
        %842 = vmatpush.msra.mxu0 %v509
        %843 = vmatpush.msra.mxu0 %v507
        %844 = vmatpush.msra.mxu0 %v505
        %845 = vmatpush.msra.mxu0 %v503
        %846 = vmatpush.msra.mxu0 %v501
        %847 = vmatpush.msra.mxu0 %v499
        %848 = vmatpush.msra.mxu0 %v497
        %849 = vmatpush.msra.mxu0 %v495
        %850 = vmatpush.msra.mxu0 %v493
        %851 = vmatpush.msra.mxu0 %v491
        %852 = vmatpush.msra.mxu0 %v489
        %853 = vmatpush.msra.mxu0 %v487
        %854 = vmatpush.msra.mxu0 %v485
        %855 = vmatpush.msra.mxu0 %v483
        %856 = vmatpush.msra.mxu0 %v481
        %857 = vmatmul.f32.gmra.mxu0 %v227
        %v858 = vpop.f32.mrf.mxu0
        %v859 = vadd.f32 %v746, %v858
        %860 = vmatmul.f32.gmra.mxu0 %v233
        %v861 = vpop.f32.mrf.mxu0
        %v862 = vadd.f32 %v749, %v861
        %863 = vmatmul.f32.gmra.mxu0 %v239
        %v864 = vpop.f32.mrf.mxu0
        %v865 = vadd.f32 %v752, %v864
        %866 = vmatmul.f32.gmra.mxu0 %v245
        %v867 = vpop.f32.mrf.mxu0
        %v868 = vadd.f32 %v755, %v867
        %869 = vmatmul.f32.gmra.mxu0 %v251
        %v870 = vpop.f32.mrf.mxu0
        %v871 = vadd.f32 %v758, %v870
        %872 = vmatmul.f32.gmra.mxu0 %v257
        %v873 = vpop.f32.mrf.mxu0
        %v874 = vadd.f32 %v761, %v873
        %875 = vmatmul.f32.gmra.mxu0 %v263
        %v876 = vpop.f32.mrf.mxu0
        %v877 = vadd.f32 %v764, %v876
        %878 = vmatmul.f32.gmra.mxu0 %v269
        %v879 = vpop.f32.mrf.mxu0
        %v880 = vadd.f32 %v767, %v879
        %881 = vmatmul.f32.gmra.mxu0 %v275
        %v882 = vpop.f32.mrf.mxu0
        %v883 = vadd.f32 %v770, %v882
        %884 = vmatmul.f32.gmra.mxu0 %v281
        %v885 = vpop.f32.mrf.mxu0
        %v886 = vadd.f32 %v773, %v885
        %887 = vmatmul.f32.gmra.mxu0 %v287
        %v888 = vpop.f32.mrf.mxu0
        %v889 = vadd.f32 %v776, %v888
        %890 = vmatmul.f32.gmra.mxu0 %v293
        %v891 = vpop.f32.mrf.mxu0
        %v892 = vadd.f32 %v779, %v891
        %893 = vmatmul.f32.gmra.mxu0 %v299
        %v894 = vpop.f32.mrf.mxu0
        %v895 = vadd.f32 %v782, %v894
        %896 = vmatmul.f32.gmra.mxu0 %v305
        %v897 = vpop.f32.mrf.mxu0
        %v898 = vadd.f32 %v785, %v897
        %899 = vmatmul.f32.gmra.mxu0 %v311
        %v900 = vpop.f32.mrf.mxu0
        %v901 = vadd.f32 %v788, %v900
        %902 = vmatmul.f32.gmra.mxu0 %v317
        %v903 = vpop.f32.mrf.mxu0
        %v904 = vadd.f32 %v791, %v903
        %905 = vmatmul.f32.gmra.mxu0 %v323
        %v906 = vpop.f32.mrf.mxu0
        %v907 = vadd.f32 %v794, %v906
        %908 = vmatmul.f32.gmra.mxu0 %v329
        %v909 = vpop.f32.mrf.mxu0
        %v910 = vadd.f32 %v797, %v909
        %911 = vmatmul.f32.gmra.mxu0 %v335
        %v912 = vpop.f32.mrf.mxu0
        %v913 = vadd.f32 %v800, %v912
        %914 = vmatmul.f32.gmra.mxu0 %v341
        %v915 = vpop.f32.mrf.mxu0
        %v916 = vadd.f32 %v803, %v915
        %917 = vmatmul.f32.gmra.mxu0 %v347
        %v918 = vpop.f32.mrf.mxu0
        %v919 = vadd.f32 %v806, %v918
        %920 = vmatmul.f32.gmra.mxu0 %v353
        %v921 = vpop.f32.mrf.mxu0
        %v922 = vadd.f32 %v809, %v921
        %923 = vmatmul.f32.gmra.mxu0 %v359
        %v924 = vpop.f32.mrf.mxu0
        %v925 = vadd.f32 %v812, %v924
        %926 = vmatmul.f32.gmra.mxu0 %v365
        %v927 = vpop.f32.mrf.mxu0
        %v928 = vadd.f32 %v815, %v927
        %929 = vmatmul.f32.gmra.mxu0 %v371
        %v930 = vpop.f32.mrf.mxu0
        %v931 = vadd.f32 %v818, %v930
        %932 = vmatmul.f32.gmra.mxu0 %v377
        %v933 = vpop.f32.mrf.mxu0
        %v934 = vadd.f32 %v821, %v933
        %935 = vmatmul.f32.gmra.mxu0 %v383
        %v936 = vpop.f32.mrf.mxu0
        %v937 = vadd.f32 %v824, %v936
        %938 = vmatmul.f32.gmra.mxu0 %v389
        %v939 = vpop.f32.mrf.mxu0
        %v940 = vadd.f32 %v827, %v939
        %941 = vmatmul.f32.gmra.mxu0 %v395
        %v942 = vpop.f32.mrf.mxu0
        %v943 = vadd.f32 %v830, %v942
        %944 = vmatmul.f32.gmra.mxu0 %v401
        %v945 = vpop.f32.mrf.mxu0
        %v946 = vadd.f32 %v833, %v945
        %947 = vmatmul.f32.gmra.mxu0 %v407
        %v948 = vpop.f32.mrf.mxu0
        %v949 = vadd.f32 %v836, %v948
        %950 = vmatmul.f32.gmra.mxu0 %v413
        %v951 = vpop.f32.mrf.mxu0
        %v952 = vadd.f32 %v839, %v951
        %953 = vdwg.mxu0
        %954 = vmatpush.msra.mxu0 %v543
        %955 = vmatpush.msra.mxu0 %v541
        %956 = vmatpush.msra.mxu0 %v539
        %957 = vmatpush.msra.mxu0 %v537
        %958 = vmatpush.msra.mxu0 %v535
        %959 = vmatpush.msra.mxu0 %v533
        %960 = vmatpush.msra.mxu0 %v531
        %961 = vmatpush.msra.mxu0 %v529
        %962 = vmatpush.msra.mxu0 %v527
        %963 = vmatpush.msra.mxu0 %v525
        %964 = vmatpush.msra.mxu0 %v523
        %965 = vmatpush.msra.mxu0 %v521
        %966 = vmatpush.msra.mxu0 %v519
        %967 = vmatpush.msra.mxu0 %v517
        %968 = vmatpush.msra.mxu0 %v515
        %969 = vmatpush.msra.mxu0 %v513
        %970 = vmatmul.f32.gmra.mxu0 %v228
        %v971 = vpop.f32.mrf.mxu0
        %v972 = vadd.f32 %v859, %v971
        %973 = vmatmul.f32.gmra.mxu0 %v234
        %v974 = vpop.f32.mrf.mxu0
        %v975 = vadd.f32 %v862, %v974
        %976 = vmatmul.f32.gmra.mxu0 %v240
        %v977 = vpop.f32.mrf.mxu0
        %v978 = vadd.f32 %v865, %v977
        %979 = vmatmul.f32.gmra.mxu0 %v246
        %v980 = vpop.f32.mrf.mxu0
        %v981 = vadd.f32 %v868, %v980
        %982 = vmatmul.f32.gmra.mxu0 %v252
        %v983 = vpop.f32.mrf.mxu0
        %v984 = vadd.f32 %v871, %v983
        %985 = vmatmul.f32.gmra.mxu0 %v258
        %v986 = vpop.f32.mrf.mxu0
        %v987 = vadd.f32 %v874, %v986
        %988 = vmatmul.f32.gmra.mxu0 %v264
        %v989 = vpop.f32.mrf.mxu0
        %v990 = vadd.f32 %v877, %v989
        %991 = vmatmul.f32.gmra.mxu0 %v270
        %v992 = vpop.f32.mrf.mxu0
        %v993 = vadd.f32 %v880, %v992
        %994 = vmatmul.f32.gmra.mxu0 %v276
        %v995 = vpop.f32.mrf.mxu0
        %v996 = vadd.f32 %v883, %v995
        %997 = vmatmul.f32.gmra.mxu0 %v282
        %v998 = vpop.f32.mrf.mxu0
        %v999 = vadd.f32 %v886, %v998
        %1000 = vmatmul.f32.gmra.mxu0 %v288
        %v1001 = vpop.f32.mrf.mxu0
        %v1002 = vadd.f32 %v889, %v1001
        %1003 = vmatmul.f32.gmra.mxu0 %v294
        %v1004 = vpop.f32.mrf.mxu0
        %v1005 = vadd.f32 %v892, %v1004
        %1006 = vmatmul.f32.gmra.mxu0 %v300
        %v1007 = vpop.f32.mrf.mxu0
        %v1008 = vadd.f32 %v895, %v1007
        %1009 = vmatmul.f32.gmra.mxu0 %v306
        %v1010 = vpop.f32.mrf.mxu0
        %v1011 = vadd.f32 %v898, %v1010
        %1012 = vmatmul.f32.gmra.mxu0 %v312
        %v1013 = vpop.f32.mrf.mxu0
        %v1014 = vadd.f32 %v901, %v1013
        %1015 = vmatmul.f32.gmra.mxu0 %v318
        %v1016 = vpop.f32.mrf.mxu0
        %v1017 = vadd.f32 %v904, %v1016
        %1018 = vmatmul.f32.gmra.mxu0 %v324
        %v1019 = vpop.f32.mrf.mxu0
        %v1020 = vadd.f32 %v907, %v1019
        %1021 = vmatmul.f32.gmra.mxu0 %v330
        %v1022 = vpop.f32.mrf.mxu0
        %v1023 = vadd.f32 %v910, %v1022
        %1024 = vmatmul.f32.gmra.mxu0 %v336
        %v1025 = vpop.f32.mrf.mxu0
        %v1026 = vadd.f32 %v913, %v1025
        %1027 = vmatmul.f32.gmra.mxu0 %v342
        %v1028 = vpop.f32.mrf.mxu0
        %v1029 = vadd.f32 %v916, %v1028
        %1030 = vmatmul.f32.gmra.mxu0 %v348
        %v1031 = vpop.f32.mrf.mxu0
        %v1032 = vadd.f32 %v919, %v1031
        %1033 = vmatmul.f32.gmra.mxu0 %v354
        %v1034 = vpop.f32.mrf.mxu0
        %v1035 = vadd.f32 %v922, %v1034
        %1036 = vmatmul.f32.gmra.mxu0 %v360
        %v1037 = vpop.f32.mrf.mxu0
        %v1038 = vadd.f32 %v925, %v1037
        %1039 = vmatmul.f32.gmra.mxu0 %v366
        %v1040 = vpop.f32.mrf.mxu0
        %v1041 = vadd.f32 %v928, %v1040
        %1042 = vmatmul.f32.gmra.mxu0 %v372
        %v1043 = vpop.f32.mrf.mxu0
        %v1044 = vadd.f32 %v931, %v1043
        %1045 = vmatmul.f32.gmra.mxu0 %v378
        %v1046 = vpop.f32.mrf.mxu0
        %v1047 = vadd.f32 %v934, %v1046
        %1048 = vmatmul.f32.gmra.mxu0 %v384
        %v1049 = vpop.f32.mrf.mxu0
        %v1050 = vadd.f32 %v937, %v1049
        %1051 = vmatmul.f32.gmra.mxu0 %v390
        %v1052 = vpop.f32.mrf.mxu0
        %v1053 = vadd.f32 %v940, %v1052
        %1054 = vmatmul.f32.gmra.mxu0 %v396
        %v1055 = vpop.f32.mrf.mxu0
        %v1056 = vadd.f32 %v943, %v1055
        %1057 = vmatmul.f32.gmra.mxu0 %v402
        %v1058 = vpop.f32.mrf.mxu0
        %v1059 = vadd.f32 %v946, %v1058
        %1060 = vmatmul.f32.gmra.mxu0 %v408
        %v1061 = vpop.f32.mrf.mxu0
        %v1062 = vadd.f32 %v949, %v1061
        %1063 = vmatmul.f32.gmra.mxu0 %v414
        %v1064 = vpop.f32.mrf.mxu0
        %v1065 = vadd.f32 %v952, %v1064
        %1066 = vdwg.mxu0
        %1067 = vmatpush.msra.mxu0 %v575
        %1068 = vmatpush.msra.mxu0 %v573
        %1069 = vmatpush.msra.mxu0 %v571
        %1070 = vmatpush.msra.mxu0 %v569
        %1071 = vmatpush.msra.mxu0 %v567
        %1072 = vmatpush.msra.mxu0 %v565
        %1073 = vmatpush.msra.mxu0 %v563
        %1074 = vmatpush.msra.mxu0 %v561
        %1075 = vmatpush.msra.mxu0 %v559
        %1076 = vmatpush.msra.mxu0 %v557
        %1077 = vmatpush.msra.mxu0 %v555
        %1078 = vmatpush.msra.mxu0 %v553
        %1079 = vmatpush.msra.mxu0 %v551
        %1080 = vmatpush.msra.mxu0 %v549
        %1081 = vmatpush.msra.mxu0 %v547
        %1082 = vmatpush.msra.mxu0 %v545
        %1083 = vmatmul.f32.gmra.mxu0 %v229
        %v1084 = vpop.f32.mrf.mxu0
        %v1085 = vadd.f32 %v972, %v1084
        %1086 = vmatmul.f32.gmra.mxu0 %v235
        %v1087 = vpop.f32.mrf.mxu0
        %v1088 = vadd.f32 %v975, %v1087
        %1089 = vmatmul.f32.gmra.mxu0 %v241
        %v1090 = vpop.f32.mrf.mxu0
        %v1091 = vadd.f32 %v978, %v1090
        %1092 = vmatmul.f32.gmra.mxu0 %v247
        %v1093 = vpop.f32.mrf.mxu0
        %v1094 = vadd.f32 %v981, %v1093
        %1095 = vmatmul.f32.gmra.mxu0 %v253
        %v1096 = vpop.f32.mrf.mxu0
        %v1097 = vadd.f32 %v984, %v1096
        %1098 = vmatmul.f32.gmra.mxu0 %v259
        %v1099 = vpop.f32.mrf.mxu0
        %v1100 = vadd.f32 %v987, %v1099
        %1101 = vmatmul.f32.gmra.mxu0 %v265
        %v1102 = vpop.f32.mrf.mxu0
        %v1103 = vadd.f32 %v990, %v1102
        %1104 = vmatmul.f32.gmra.mxu0 %v271
        %v1105 = vpop.f32.mrf.mxu0
        %v1106 = vadd.f32 %v993, %v1105
        %1107 = vmatmul.f32.gmra.mxu0 %v277
        %v1108 = vpop.f32.mrf.mxu0
        %v1109 = vadd.f32 %v996, %v1108
        %1110 = vmatmul.f32.gmra.mxu0 %v283
        %v1111 = vpop.f32.mrf.mxu0
        %v1112 = vadd.f32 %v999, %v1111
        %1113 = vmatmul.f32.gmra.mxu0 %v289
        %v1114 = vpop.f32.mrf.mxu0
        %v1115 = vadd.f32 %v1002, %v1114
        %1116 = vmatmul.f32.gmra.mxu0 %v295
        %v1117 = vpop.f32.mrf.mxu0
        %v1118 = vadd.f32 %v1005, %v1117
        %1119 = vmatmul.f32.gmra.mxu0 %v301
        %v1120 = vpop.f32.mrf.mxu0
        %v1121 = vadd.f32 %v1008, %v1120
        %1122 = vmatmul.f32.gmra.mxu0 %v307
        %v1123 = vpop.f32.mrf.mxu0
        %v1124 = vadd.f32 %v1011, %v1123
        %1125 = vmatmul.f32.gmra.mxu0 %v313
        %v1126 = vpop.f32.mrf.mxu0
        %v1127 = vadd.f32 %v1014, %v1126
        %1128 = vmatmul.f32.gmra.mxu0 %v319
        %v1129 = vpop.f32.mrf.mxu0
        %v1130 = vadd.f32 %v1017, %v1129
        %1131 = vmatmul.f32.gmra.mxu0 %v325
        %v1132 = vpop.f32.mrf.mxu0
        %v1133 = vadd.f32 %v1020, %v1132
        %1134 = vmatmul.f32.gmra.mxu0 %v331
        %v1135 = vpop.f32.mrf.mxu0
        %v1136 = vadd.f32 %v1023, %v1135
        %1137 = vmatmul.f32.gmra.mxu0 %v337
        %v1138 = vpop.f32.mrf.mxu0
        %v1139 = vadd.f32 %v1026, %v1138
        %1140 = vmatmul.f32.gmra.mxu0 %v343
        %v1141 = vpop.f32.mrf.mxu0
        %v1142 = vadd.f32 %v1029, %v1141
        %1143 = vmatmul.f32.gmra.mxu0 %v349
        %v1144 = vpop.f32.mrf.mxu0
        %v1145 = vadd.f32 %v1032, %v1144
        %1146 = vmatmul.f32.gmra.mxu0 %v355
        %v1147 = vpop.f32.mrf.mxu0
        %v1148 = vadd.f32 %v1035, %v1147
        %1149 = vmatmul.f32.gmra.mxu0 %v361
        %v1150 = vpop.f32.mrf.mxu0
        %v1151 = vadd.f32 %v1038, %v1150
        %1152 = vmatmul.f32.gmra.mxu0 %v367
        %v1153 = vpop.f32.mrf.mxu0
        %v1154 = vadd.f32 %v1041, %v1153
        %1155 = vmatmul.f32.gmra.mxu0 %v373
        %v1156 = vpop.f32.mrf.mxu0
        %v1157 = vadd.f32 %v1044, %v1156
        %1158 = vmatmul.f32.gmra.mxu0 %v379
        %v1159 = vpop.f32.mrf.mxu0
        %v1160 = vadd.f32 %v1047, %v1159
        %1161 = vmatmul.f32.gmra.mxu0 %v385
        %v1162 = vpop.f32.mrf.mxu0
        %v1163 = vadd.f32 %v1050, %v1162
        %1164 = vmatmul.f32.gmra.mxu0 %v391
        %v1165 = vpop.f32.mrf.mxu0
        %v1166 = vadd.f32 %v1053, %v1165
        %1167 = vmatmul.f32.gmra.mxu0 %v397
        %v1168 = vpop.f32.mrf.mxu0
        %v1169 = vadd.f32 %v1056, %v1168
        %1170 = vmatmul.f32.gmra.mxu0 %v403
        %v1171 = vpop.f32.mrf.mxu0
        %v1172 = vadd.f32 %v1059, %v1171
        %1173 = vmatmul.f32.gmra.mxu0 %v409
        %v1174 = vpop.f32.mrf.mxu0
        %v1175 = vadd.f32 %v1062, %v1174
        %1176 = vmatmul.f32.gmra.mxu0 %v415
        %v1177 = vpop.f32.mrf.mxu0
        %v1178 = vadd.f32 %v1065, %v1177
        %1179 = vdwg.mxu0
        %1180 = vmatpush.msra.mxu0 %v607
        %1181 = vmatpush.msra.mxu0 %v605
        %1182 = vmatpush.msra.mxu0 %v603
        %1183 = vmatpush.msra.mxu0 %v601
        %1184 = vmatpush.msra.mxu0 %v599
        %1185 = vmatpush.msra.mxu0 %v597
        %1186 = vmatpush.msra.mxu0 %v595
        %1187 = vmatpush.msra.mxu0 %v593
        %1188 = vmatpush.msra.mxu0 %v591
        %1189 = vmatpush.msra.mxu0 %v589
        %1190 = vmatpush.msra.mxu0 %v587
        %1191 = vmatpush.msra.mxu0 %v585
        %1192 = vmatpush.msra.mxu0 %v583
        %1193 = vmatpush.msra.mxu0 %v581
        %1194 = vmatpush.msra.mxu0 %v579
        %1195 = vmatpush.msra.mxu0 %v577
        %1196 = vmatmul.f32.gmra.mxu0 %v230
        %v1197 = vpop.f32.mrf.mxu0
        %v1198 = vadd.f32 %v1085, %v1197
        %1199 = vmatmul.f32.gmra.mxu0 %v236
        %v1200 = vpop.f32.mrf.mxu0
        %v1201 = vadd.f32 %v1088, %v1200
        %1202 = vmatmul.f32.gmra.mxu0 %v242
        %v1203 = vpop.f32.mrf.mxu0
        %v1204 = vadd.f32 %v1091, %v1203
        %1205 = vmatmul.f32.gmra.mxu0 %v248
        %v1206 = vpop.f32.mrf.mxu0
        %v1207 = vadd.f32 %v1094, %v1206
        %1208 = vmatmul.f32.gmra.mxu0 %v254
        %v1209 = vpop.f32.mrf.mxu0
        %v1210 = vadd.f32 %v1097, %v1209
        %1211 = vmatmul.f32.gmra.mxu0 %v260
        %v1212 = vpop.f32.mrf.mxu0
        %v1213 = vadd.f32 %v1100, %v1212
        %1214 = vmatmul.f32.gmra.mxu0 %v266
        %v1215 = vpop.f32.mrf.mxu0
        %v1216 = vadd.f32 %v1103, %v1215
        %1217 = vmatmul.f32.gmra.mxu0 %v272
        %v1218 = vpop.f32.mrf.mxu0
        %v1219 = vadd.f32 %v1106, %v1218
        %1220 = vmatmul.f32.gmra.mxu0 %v278
        %v1221 = vpop.f32.mrf.mxu0
        %v1222 = vadd.f32 %v1109, %v1221
        %1223 = vmatmul.f32.gmra.mxu0 %v284
        %v1224 = vpop.f32.mrf.mxu0
        %v1225 = vadd.f32 %v1112, %v1224
        %1226 = vmatmul.f32.gmra.mxu0 %v290
        %v1227 = vpop.f32.mrf.mxu0
        %v1228 = vadd.f32 %v1115, %v1227
        %1229 = vmatmul.f32.gmra.mxu0 %v296
        %v1230 = vpop.f32.mrf.mxu0
        %v1231 = vadd.f32 %v1118, %v1230
        %1232 = vmatmul.f32.gmra.mxu0 %v302
        %v1233 = vpop.f32.mrf.mxu0
        %v1234 = vadd.f32 %v1121, %v1233
        %1235 = vmatmul.f32.gmra.mxu0 %v308
        %v1236 = vpop.f32.mrf.mxu0
        %v1237 = vadd.f32 %v1124, %v1236
        %1238 = vmatmul.f32.gmra.mxu0 %v314
        %v1239 = vpop.f32.mrf.mxu0
        %v1240 = vadd.f32 %v1127, %v1239
        %1241 = vmatmul.f32.gmra.mxu0 %v320
        %v1242 = vpop.f32.mrf.mxu0
        %v1243 = vadd.f32 %v1130, %v1242
        %1244 = vmatmul.f32.gmra.mxu0 %v326
        %v1245 = vpop.f32.mrf.mxu0
        %v1246 = vadd.f32 %v1133, %v1245
        %1247 = vmatmul.f32.gmra.mxu0 %v332
        %v1248 = vpop.f32.mrf.mxu0
        %v1249 = vadd.f32 %v1136, %v1248
        %1250 = vmatmul.f32.gmra.mxu0 %v338
        %v1251 = vpop.f32.mrf.mxu0
        %v1252 = vadd.f32 %v1139, %v1251
        %1253 = vmatmul.f32.gmra.mxu0 %v344
        %v1254 = vpop.f32.mrf.mxu0
        %v1255 = vadd.f32 %v1142, %v1254
        %1256 = vmatmul.f32.gmra.mxu0 %v350
        %v1257 = vpop.f32.mrf.mxu0
        %v1258 = vadd.f32 %v1145, %v1257
        %1259 = vmatmul.f32.gmra.mxu0 %v356
        %v1260 = vpop.f32.mrf.mxu0
        %v1261 = vadd.f32 %v1148, %v1260
        %1262 = vmatmul.f32.gmra.mxu0 %v362
        %v1263 = vpop.f32.mrf.mxu0
        %v1264 = vadd.f32 %v1151, %v1263
        %1265 = vmatmul.f32.gmra.mxu0 %v368
        %v1266 = vpop.f32.mrf.mxu0
        %v1267 = vadd.f32 %v1154, %v1266
        %1268 = vmatmul.f32.gmra.mxu0 %v374
        %v1269 = vpop.f32.mrf.mxu0
        %v1270 = vadd.f32 %v1157, %v1269
        %1271 = vmatmul.f32.gmra.mxu0 %v380
        %v1272 = vpop.f32.mrf.mxu0
        %v1273 = vadd.f32 %v1160, %v1272
        %1274 = vmatmul.f32.gmra.mxu0 %v386
        %v1275 = vpop.f32.mrf.mxu0
        %v1276 = vadd.f32 %v1163, %v1275
        %1277 = vmatmul.f32.gmra.mxu0 %v392
        %v1278 = vpop.f32.mrf.mxu0
        %v1279 = vadd.f32 %v1166, %v1278
        %1280 = vmatmul.f32.gmra.mxu0 %v398
        %v1281 = vpop.f32.mrf.mxu0
        %v1282 = vadd.f32 %v1169, %v1281
        %1283 = vmatmul.f32.gmra.mxu0 %v404
        %v1284 = vpop.f32.mrf.mxu0
        %v1285 = vadd.f32 %v1172, %v1284
        %1286 = vmatmul.f32.gmra.mxu0 %v410
        %v1287 = vpop.f32.mrf.mxu0
        %v1288 = vadd.f32 %v1175, %v1287
        %1289 = vmatmul.f32.gmra.mxu0 %v416
        %v1290 = vpop.f32.mrf.mxu0
        %v1291 = vadd.f32 %v1178, %v1290
        %1292 = vdwg.mxu0
        %1293 = vmatpush.msra.mxu0 %v448
        %1294 = vmatpush.msra.mxu0 %v446
        %1295 = vmatpush.msra.mxu0 %v444
        %1296 = vmatpush.msra.mxu0 %v442
        %1297 = vmatpush.msra.mxu0 %v440
        %1298 = vmatpush.msra.mxu0 %v438
        %1299 = vmatpush.msra.mxu0 %v436
        %1300 = vmatpush.msra.mxu0 %v434
        %1301 = vmatpush.msra.mxu0 %v432
        %1302 = vmatpush.msra.mxu0 %v430
        %1303 = vmatpush.msra.mxu0 %v428
        %1304 = vmatpush.msra.mxu0 %v426
        %1305 = vmatpush.msra.mxu0 %v424
        %1306 = vmatpush.msra.mxu0 %v422
        %1307 = vmatpush.msra.mxu0 %v420
        %1308 = vmatpush.msra.mxu0 %v418
        %1309 = vmatmul.f32.gmra.mxu0 %v225
        %v1310 = vpop.f32.mrf.mxu0
        %v1311 = vadd.f32 %v612, %v1310
        %1312 = vmatmul.f32.gmra.mxu0 %v231
        %v1313 = vpop.f32.mrf.mxu0
        %v1314 = vadd.f32 %v612, %v1313
        %1315 = vmatmul.f32.gmra.mxu0 %v237
        %v1316 = vpop.f32.mrf.mxu0
        %v1317 = vadd.f32 %v612, %v1316
        %1318 = vmatmul.f32.gmra.mxu0 %v243
        %v1319 = vpop.f32.mrf.mxu0
        %v1320 = vadd.f32 %v612, %v1319
        %1321 = vmatmul.f32.gmra.mxu0 %v249
        %v1322 = vpop.f32.mrf.mxu0
        %v1323 = vadd.f32 %v612, %v1322
        %1324 = vmatmul.f32.gmra.mxu0 %v255
        %v1325 = vpop.f32.mrf.mxu0
        %v1326 = vadd.f32 %v612, %v1325
        %1327 = vmatmul.f32.gmra.mxu0 %v261
        %v1328 = vpop.f32.mrf.mxu0
        %v1329 = vadd.f32 %v612, %v1328
        %1330 = vmatmul.f32.gmra.mxu0 %v267
        %v1331 = vpop.f32.mrf.mxu0
        %v1332 = vadd.f32 %v612, %v1331
        %1333 = vmatmul.f32.gmra.mxu0 %v273
        %v1334 = vpop.f32.mrf.mxu0
        %v1335 = vadd.f32 %v612, %v1334
        %1336 = vmatmul.f32.gmra.mxu0 %v279
        %v1337 = vpop.f32.mrf.mxu0
        %v1338 = vadd.f32 %v612, %v1337
        %1339 = vmatmul.f32.gmra.mxu0 %v285
        %v1340 = vpop.f32.mrf.mxu0
        %v1341 = vadd.f32 %v612, %v1340
        %1342 = vmatmul.f32.gmra.mxu0 %v291
        %v1343 = vpop.f32.mrf.mxu0
        %v1344 = vadd.f32 %v612, %v1343
        %1345 = vmatmul.f32.gmra.mxu0 %v297
        %v1346 = vpop.f32.mrf.mxu0
        %v1347 = vadd.f32 %v612, %v1346
        %1348 = vmatmul.f32.gmra.mxu0 %v303
        %v1349 = vpop.f32.mrf.mxu0
        %v1350 = vadd.f32 %v612, %v1349
        %1351 = vmatmul.f32.gmra.mxu0 %v309
        %v1352 = vpop.f32.mrf.mxu0
        %v1353 = vadd.f32 %v612, %v1352
        %1354 = vmatmul.f32.gmra.mxu0 %v315
        %v1355 = vpop.f32.mrf.mxu0
        %v1356 = vadd.f32 %v612, %v1355
        %1357 = vmatmul.f32.gmra.mxu0 %v321
        %v1358 = vpop.f32.mrf.mxu0
        %v1359 = vadd.f32 %v612, %v1358
        %1360 = vmatmul.f32.gmra.mxu0 %v327
        %v1361 = vpop.f32.mrf.mxu0
        %v1362 = vadd.f32 %v612, %v1361
        %1363 = vmatmul.f32.gmra.mxu0 %v333
        %v1364 = vpop.f32.mrf.mxu0
        %v1365 = vadd.f32 %v612, %v1364
        %1366 = vmatmul.f32.gmra.mxu0 %v339
        %v1367 = vpop.f32.mrf.mxu0
        %v1368 = vadd.f32 %v612, %v1367
        %1369 = vmatmul.f32.gmra.mxu0 %v345
        %v1370 = vpop.f32.mrf.mxu0
        %v1371 = vadd.f32 %v612, %v1370
        %1372 = vmatmul.f32.gmra.mxu0 %v351
        %v1373 = vpop.f32.mrf.mxu0
        %v1374 = vadd.f32 %v612, %v1373
        %1375 = vmatmul.f32.gmra.mxu0 %v357
        %v1376 = vpop.f32.mrf.mxu0
        %v1377 = vadd.f32 %v612, %v1376
        %1378 = vmatmul.f32.gmra.mxu0 %v363
        %v1379 = vpop.f32.mrf.mxu0
        %v1380 = vadd.f32 %v612, %v1379
        %1381 = vmatmul.f32.gmra.mxu0 %v369
        %v1382 = vpop.f32.mrf.mxu0
        %v1383 = vadd.f32 %v612, %v1382
        %1384 = vmatmul.f32.gmra.mxu0 %v375
        %v1385 = vpop.f32.mrf.mxu0
        %v1386 = vadd.f32 %v612, %v1385
        %1387 = vmatmul.f32.gmra.mxu0 %v381
        %v1388 = vpop.f32.mrf.mxu0
        %v1389 = vadd.f32 %v612, %v1388
        %1390 = vmatmul.f32.gmra.mxu0 %v387
        %v1391 = vpop.f32.mrf.mxu0
        %v1392 = vadd.f32 %v612, %v1391
        %1393 = vmatmul.f32.gmra.mxu0 %v393
        %v1394 = vpop.f32.mrf.mxu0
        %v1395 = vadd.f32 %v612, %v1394
        %1396 = vmatmul.f32.gmra.mxu0 %v399
        %v1397 = vpop.f32.mrf.mxu0
        %v1398 = vadd.f32 %v612, %v1397
        %1399 = vmatmul.f32.gmra.mxu0 %v405
        %v1400 = vpop.f32.mrf.mxu0
        %v1401 = vadd.f32 %v612, %v1400
        %1402 = vmatmul.f32.gmra.mxu0 %v411
        %v1403 = vpop.f32.mrf.mxu0
        %v1404 = vadd.f32 %v612, %v1403
        %1405 = vdwg.mxu0
        %1406 = vmatpush.msra.mxu0 %v480
        %1407 = vmatpush.msra.mxu0 %v478
        %1408 = vmatpush.msra.mxu0 %v476
        %1409 = vmatpush.msra.mxu0 %v474
        %1410 = vmatpush.msra.mxu0 %v472
        %1411 = vmatpush.msra.mxu0 %v470
        %1412 = vmatpush.msra.mxu0 %v468
        %1413 = vmatpush.msra.mxu0 %v466
        %1414 = vmatpush.msra.mxu0 %v464
        %1415 = vmatpush.msra.mxu0 %v462
        %1416 = vmatpush.msra.mxu0 %v460
        %1417 = vmatpush.msra.mxu0 %v458
        %1418 = vmatpush.msra.mxu0 %v456
        %1419 = vmatpush.msra.mxu0 %v454
        %1420 = vmatpush.msra.mxu0 %v452
        %1421 = vmatpush.msra.mxu0 %v450
        %1422 = vmatmul.f32.gmra.mxu0 %v226
        %v1423 = vpop.f32.mrf.mxu0
        %v1424 = vadd.f32 %v1311, %v1423
        %1425 = vmatmul.f32.gmra.mxu0 %v232
        %v1426 = vpop.f32.mrf.mxu0
        %v1427 = vadd.f32 %v1314, %v1426
        %1428 = vmatmul.f32.gmra.mxu0 %v238
        %v1429 = vpop.f32.mrf.mxu0
        %v1430 = vadd.f32 %v1317, %v1429
        %1431 = vmatmul.f32.gmra.mxu0 %v244
        %v1432 = vpop.f32.mrf.mxu0
        %v1433 = vadd.f32 %v1320, %v1432
        %1434 = vmatmul.f32.gmra.mxu0 %v250
        %v1435 = vpop.f32.mrf.mxu0
        %v1436 = vadd.f32 %v1323, %v1435
        %1437 = vmatmul.f32.gmra.mxu0 %v256
        %v1438 = vpop.f32.mrf.mxu0
        %v1439 = vadd.f32 %v1326, %v1438
        %1440 = vmatmul.f32.gmra.mxu0 %v262
        %v1441 = vpop.f32.mrf.mxu0
        %v1442 = vadd.f32 %v1329, %v1441
        %1443 = vmatmul.f32.gmra.mxu0 %v268
        %v1444 = vpop.f32.mrf.mxu0
        %v1445 = vadd.f32 %v1332, %v1444
        %1446 = vmatmul.f32.gmra.mxu0 %v274
        %v1447 = vpop.f32.mrf.mxu0
        %v1448 = vadd.f32 %v1335, %v1447
        %1449 = vmatmul.f32.gmra.mxu0 %v280
        %v1450 = vpop.f32.mrf.mxu0
        %v1451 = vadd.f32 %v1338, %v1450
        %1452 = vmatmul.f32.gmra.mxu0 %v286
        %v1453 = vpop.f32.mrf.mxu0
        %v1454 = vadd.f32 %v1341, %v1453
        %1455 = vmatmul.f32.gmra.mxu0 %v292
        %v1456 = vpop.f32.mrf.mxu0
        %v1457 = vadd.f32 %v1344, %v1456
        %1458 = vmatmul.f32.gmra.mxu0 %v298
        %v1459 = vpop.f32.mrf.mxu0
        %v1460 = vadd.f32 %v1347, %v1459
        %1461 = vmatmul.f32.gmra.mxu0 %v304
        %v1462 = vpop.f32.mrf.mxu0
        %v1463 = vadd.f32 %v1350, %v1462
        %1464 = vmatmul.f32.gmra.mxu0 %v310
        %v1465 = vpop.f32.mrf.mxu0
        %v1466 = vadd.f32 %v1353, %v1465
        %1467 = vmatmul.f32.gmra.mxu0 %v316
        %v1468 = vpop.f32.mrf.mxu0
        %v1469 = vadd.f32 %v1356, %v1468
        %1470 = vmatmul.f32.gmra.mxu0 %v322
        %v1471 = vpop.f32.mrf.mxu0
        %v1472 = vadd.f32 %v1359, %v1471
        %1473 = vmatmul.f32.gmra.mxu0 %v328
        %v1474 = vpop.f32.mrf.mxu0
        %v1475 = vadd.f32 %v1362, %v1474
        %1476 = vmatmul.f32.gmra.mxu0 %v334
        %v1477 = vpop.f32.mrf.mxu0
        %v1478 = vadd.f32 %v1365, %v1477
        %1479 = vmatmul.f32.gmra.mxu0 %v340
        %v1480 = vpop.f32.mrf.mxu0
        %v1481 = vadd.f32 %v1368, %v1480
        %1482 = vmatmul.f32.gmra.mxu0 %v346
        %v1483 = vpop.f32.mrf.mxu0
        %v1484 = vadd.f32 %v1371, %v1483
        %1485 = vmatmul.f32.gmra.mxu0 %v352
        %v1486 = vpop.f32.mrf.mxu0
        %v1487 = vadd.f32 %v1374, %v1486
        %1488 = vmatmul.f32.gmra.mxu0 %v358
        %v1489 = vpop.f32.mrf.mxu0
        %v1490 = vadd.f32 %v1377, %v1489
        %1491 = vmatmul.f32.gmra.mxu0 %v364
        %v1492 = vpop.f32.mrf.mxu0
        %v1493 = vadd.f32 %v1380, %v1492
        %1494 = vmatmul.f32.gmra.mxu0 %v370
        %v1495 = vpop.f32.mrf.mxu0
        %v1496 = vadd.f32 %v1383, %v1495
        %1497 = vmatmul.f32.gmra.mxu0 %v376
        %v1498 = vpop.f32.mrf.mxu0
        %v1499 = vadd.f32 %v1386, %v1498
        %1500 = vmatmul.f32.gmra.mxu0 %v382
        %v1501 = vpop.f32.mrf.mxu0
        %v1502 = vadd.f32 %v1389, %v1501
        %1503 = vmatmul.f32.gmra.mxu0 %v388
        %v1504 = vpop.f32.mrf.mxu0
        %v1505 = vadd.f32 %v1392, %v1504
        %1506 = vmatmul.f32.gmra.mxu0 %v394
        %v1507 = vpop.f32.mrf.mxu0
        %v1508 = vadd.f32 %v1395, %v1507
        %1509 = vmatmul.f32.gmra.mxu0 %v400
        %v1510 = vpop.f32.mrf.mxu0
        %v1511 = vadd.f32 %v1398, %v1510
        %1512 = vmatmul.f32.gmra.mxu0 %v406
        %v1513 = vpop.f32.mrf.mxu0
        %v1514 = vadd.f32 %v1401, %v1513
        %1515 = vmatmul.f32.gmra.mxu0 %v412
        %v1516 = vpop.f32.mrf.mxu0
        %v1517 = vadd.f32 %v1404, %v1516
        %1518 = vdwg.mxu0
        %1519 = vmatpush.msra.mxu0 %v512
        %1520 = vmatpush.msra.mxu0 %v510
        %1521 = vmatpush.msra.mxu0 %v508
        %1522 = vmatpush.msra.mxu0 %v506
        %1523 = vmatpush.msra.mxu0 %v504
        %1524 = vmatpush.msra.mxu0 %v502
        %1525 = vmatpush.msra.mxu0 %v500
        %1526 = vmatpush.msra.mxu0 %v498
        %1527 = vmatpush.msra.mxu0 %v496
        %1528 = vmatpush.msra.mxu0 %v494
        %1529 = vmatpush.msra.mxu0 %v492
        %1530 = vmatpush.msra.mxu0 %v490
        %1531 = vmatpush.msra.mxu0 %v488
        %1532 = vmatpush.msra.mxu0 %v486
        %1533 = vmatpush.msra.mxu0 %v484
        %1534 = vmatpush.msra.mxu0 %v482
        %1535 = vmatmul.f32.gmra.mxu0 %v227
        %v1536 = vpop.f32.mrf.mxu0
        %v1537 = vadd.f32 %v1424, %v1536
        %1538 = vmatmul.f32.gmra.mxu0 %v233
        %v1539 = vpop.f32.mrf.mxu0
        %v1540 = vadd.f32 %v1427, %v1539
        %1541 = vmatmul.f32.gmra.mxu0 %v239
        %v1542 = vpop.f32.mrf.mxu0
        %v1543 = vadd.f32 %v1430, %v1542
        %1544 = vmatmul.f32.gmra.mxu0 %v245
        %v1545 = vpop.f32.mrf.mxu0
        %v1546 = vadd.f32 %v1433, %v1545
        %1547 = vmatmul.f32.gmra.mxu0 %v251
        %v1548 = vpop.f32.mrf.mxu0
        %v1549 = vadd.f32 %v1436, %v1548
        %1550 = vmatmul.f32.gmra.mxu0 %v257
        %v1551 = vpop.f32.mrf.mxu0
        %v1552 = vadd.f32 %v1439, %v1551
        %1553 = vmatmul.f32.gmra.mxu0 %v263
        %v1554 = vpop.f32.mrf.mxu0
        %v1555 = vadd.f32 %v1442, %v1554
        %1556 = vmatmul.f32.gmra.mxu0 %v269
        %v1557 = vpop.f32.mrf.mxu0
        %v1558 = vadd.f32 %v1445, %v1557
        %1559 = vmatmul.f32.gmra.mxu0 %v275
        %v1560 = vpop.f32.mrf.mxu0
        %v1561 = vadd.f32 %v1448, %v1560
        %1562 = vmatmul.f32.gmra.mxu0 %v281
        %v1563 = vpop.f32.mrf.mxu0
        %v1564 = vadd.f32 %v1451, %v1563
        %1565 = vmatmul.f32.gmra.mxu0 %v287
        %v1566 = vpop.f32.mrf.mxu0
        %v1567 = vadd.f32 %v1454, %v1566
        %1568 = vmatmul.f32.gmra.mxu0 %v293
        %v1569 = vpop.f32.mrf.mxu0
        %v1570 = vadd.f32 %v1457, %v1569
        %1571 = vmatmul.f32.gmra.mxu0 %v299
        %v1572 = vpop.f32.mrf.mxu0
        %v1573 = vadd.f32 %v1460, %v1572
        %1574 = vmatmul.f32.gmra.mxu0 %v305
        %v1575 = vpop.f32.mrf.mxu0
        %v1576 = vadd.f32 %v1463, %v1575
        %1577 = vmatmul.f32.gmra.mxu0 %v311
        %v1578 = vpop.f32.mrf.mxu0
        %v1579 = vadd.f32 %v1466, %v1578
        %1580 = vmatmul.f32.gmra.mxu0 %v317
        %v1581 = vpop.f32.mrf.mxu0
        %v1582 = vadd.f32 %v1469, %v1581
        %1583 = vmatmul.f32.gmra.mxu0 %v323
        %v1584 = vpop.f32.mrf.mxu0
        %v1585 = vadd.f32 %v1472, %v1584
        %1586 = vmatmul.f32.gmra.mxu0 %v329
        %v1587 = vpop.f32.mrf.mxu0
        %v1588 = vadd.f32 %v1475, %v1587
        %1589 = vmatmul.f32.gmra.mxu0 %v335
        %v1590 = vpop.f32.mrf.mxu0
        %v1591 = vadd.f32 %v1478, %v1590
        %1592 = vmatmul.f32.gmra.mxu0 %v341
        %v1593 = vpop.f32.mrf.mxu0
        %v1594 = vadd.f32 %v1481, %v1593
        %1595 = vmatmul.f32.gmra.mxu0 %v347
        %v1596 = vpop.f32.mrf.mxu0
        %v1597 = vadd.f32 %v1484, %v1596
        %1598 = vmatmul.f32.gmra.mxu0 %v353
        %v1599 = vpop.f32.mrf.mxu0
        %v1600 = vadd.f32 %v1487, %v1599
        %1601 = vmatmul.f32.gmra.mxu0 %v359
        %v1602 = vpop.f32.mrf.mxu0
        %v1603 = vadd.f32 %v1490, %v1602
        %1604 = vmatmul.f32.gmra.mxu0 %v365
        %v1605 = vpop.f32.mrf.mxu0
        %v1606 = vadd.f32 %v1493, %v1605
        %1607 = vmatmul.f32.gmra.mxu0 %v371
        %v1608 = vpop.f32.mrf.mxu0
        %v1609 = vadd.f32 %v1496, %v1608
        %1610 = vmatmul.f32.gmra.mxu0 %v377
        %v1611 = vpop.f32.mrf.mxu0
        %v1612 = vadd.f32 %v1499, %v1611
        %1613 = vmatmul.f32.gmra.mxu0 %v383
        %v1614 = vpop.f32.mrf.mxu0
        %v1615 = vadd.f32 %v1502, %v1614
        %1616 = vmatmul.f32.gmra.mxu0 %v389
        %v1617 = vpop.f32.mrf.mxu0
        %v1618 = vadd.f32 %v1505, %v1617
        %1619 = vmatmul.f32.gmra.mxu0 %v395
        %v1620 = vpop.f32.mrf.mxu0
        %v1621 = vadd.f32 %v1508, %v1620
        %1622 = vmatmul.f32.gmra.mxu0 %v401
        %v1623 = vpop.f32.mrf.mxu0
        %v1624 = vadd.f32 %v1511, %v1623
        %1625 = vmatmul.f32.gmra.mxu0 %v407
        %v1626 = vpop.f32.mrf.mxu0
        %v1627 = vadd.f32 %v1514, %v1626
        %1628 = vmatmul.f32.gmra.mxu0 %v413
        %v1629 = vpop.f32.mrf.mxu0
        %v1630 = vadd.f32 %v1517, %v1629
        %1631 = vdwg.mxu0
        %1632 = vmatpush.msra.mxu0 %v544
        %1633 = vmatpush.msra.mxu0 %v542
        %1634 = vmatpush.msra.mxu0 %v540
        %1635 = vmatpush.msra.mxu0 %v538
        %1636 = vmatpush.msra.mxu0 %v536
        %1637 = vmatpush.msra.mxu0 %v534
        %1638 = vmatpush.msra.mxu0 %v532
        %1639 = vmatpush.msra.mxu0 %v530
        %1640 = vmatpush.msra.mxu0 %v528
        %1641 = vmatpush.msra.mxu0 %v526
        %1642 = vmatpush.msra.mxu0 %v524
        %1643 = vmatpush.msra.mxu0 %v522
        %1644 = vmatpush.msra.mxu0 %v520
        %1645 = vmatpush.msra.mxu0 %v518
        %1646 = vmatpush.msra.mxu0 %v516
        %1647 = vmatpush.msra.mxu0 %v514
        %1648 = vmatmul.f32.gmra.mxu0 %v228
        %v1649 = vpop.f32.mrf.mxu0
        %v1650 = vadd.f32 %v1537, %v1649
        %1651 = vmatmul.f32.gmra.mxu0 %v234
        %v1652 = vpop.f32.mrf.mxu0
        %v1653 = vadd.f32 %v1540, %v1652
        %1654 = vmatmul.f32.gmra.mxu0 %v240
        %v1655 = vpop.f32.mrf.mxu0
        %v1656 = vadd.f32 %v1543, %v1655
        %1657 = vmatmul.f32.gmra.mxu0 %v246
        %v1658 = vpop.f32.mrf.mxu0
        %v1659 = vadd.f32 %v1546, %v1658
        %1660 = vmatmul.f32.gmra.mxu0 %v252
        %v1661 = vpop.f32.mrf.mxu0
        %v1662 = vadd.f32 %v1549, %v1661
        %1663 = vmatmul.f32.gmra.mxu0 %v258
        %v1664 = vpop.f32.mrf.mxu0
        %v1665 = vadd.f32 %v1552, %v1664
        %1666 = vmatmul.f32.gmra.mxu0 %v264
        %v1667 = vpop.f32.mrf.mxu0
        %v1668 = vadd.f32 %v1555, %v1667
        %1669 = vmatmul.f32.gmra.mxu0 %v270
        %v1670 = vpop.f32.mrf.mxu0
        %v1671 = vadd.f32 %v1558, %v1670
        %1672 = vmatmul.f32.gmra.mxu0 %v276
        %v1673 = vpop.f32.mrf.mxu0
        %v1674 = vadd.f32 %v1561, %v1673
        %1675 = vmatmul.f32.gmra.mxu0 %v282
        %v1676 = vpop.f32.mrf.mxu0
        %v1677 = vadd.f32 %v1564, %v1676
        %1678 = vmatmul.f32.gmra.mxu0 %v288
        %v1679 = vpop.f32.mrf.mxu0
        %v1680 = vadd.f32 %v1567, %v1679
        %1681 = vmatmul.f32.gmra.mxu0 %v294
        %v1682 = vpop.f32.mrf.mxu0
        %v1683 = vadd.f32 %v1570, %v1682
        %1684 = vmatmul.f32.gmra.mxu0 %v300
        %v1685 = vpop.f32.mrf.mxu0
        %v1686 = vadd.f32 %v1573, %v1685
        %1687 = vmatmul.f32.gmra.mxu0 %v306
        %v1688 = vpop.f32.mrf.mxu0
        %v1689 = vadd.f32 %v1576, %v1688
        %1690 = vmatmul.f32.gmra.mxu0 %v312
        %v1691 = vpop.f32.mrf.mxu0
        %v1692 = vadd.f32 %v1579, %v1691
        %1693 = vmatmul.f32.gmra.mxu0 %v318
        %v1694 = vpop.f32.mrf.mxu0
        %v1695 = vadd.f32 %v1582, %v1694
        %1696 = vmatmul.f32.gmra.mxu0 %v324
        %v1697 = vpop.f32.mrf.mxu0
        %v1698 = vadd.f32 %v1585, %v1697
        %1699 = vmatmul.f32.gmra.mxu0 %v330
        %v1700 = vpop.f32.mrf.mxu0
        %v1701 = vadd.f32 %v1588, %v1700
        %1702 = vmatmul.f32.gmra.mxu0 %v336
        %v1703 = vpop.f32.mrf.mxu0
        %v1704 = vadd.f32 %v1591, %v1703
        %1705 = vmatmul.f32.gmra.mxu0 %v342
        %v1706 = vpop.f32.mrf.mxu0
        %v1707 = vadd.f32 %v1594, %v1706
        %1708 = vmatmul.f32.gmra.mxu0 %v348
        %v1709 = vpop.f32.mrf.mxu0
        %v1710 = vadd.f32 %v1597, %v1709
        %1711 = vmatmul.f32.gmra.mxu0 %v354
        %v1712 = vpop.f32.mrf.mxu0
        %v1713 = vadd.f32 %v1600, %v1712
        %1714 = vmatmul.f32.gmra.mxu0 %v360
        %v1715 = vpop.f32.mrf.mxu0
        %v1716 = vadd.f32 %v1603, %v1715
        %1717 = vmatmul.f32.gmra.mxu0 %v366
        %v1718 = vpop.f32.mrf.mxu0
        %v1719 = vadd.f32 %v1606, %v1718
        %1720 = vmatmul.f32.gmra.mxu0 %v372
        %v1721 = vpop.f32.mrf.mxu0
        %v1722 = vadd.f32 %v1609, %v1721
        %1723 = vmatmul.f32.gmra.mxu0 %v378
        %v1724 = vpop.f32.mrf.mxu0
        %v1725 = vadd.f32 %v1612, %v1724
        %1726 = vmatmul.f32.gmra.mxu0 %v384
        %v1727 = vpop.f32.mrf.mxu0
        %v1728 = vadd.f32 %v1615, %v1727
        %1729 = vmatmul.f32.gmra.mxu0 %v390
        %v1730 = vpop.f32.mrf.mxu0
        %v1731 = vadd.f32 %v1618, %v1730
        %1732 = vmatmul.f32.gmra.mxu0 %v396
        %v1733 = vpop.f32.mrf.mxu0
        %v1734 = vadd.f32 %v1621, %v1733
        %1735 = vmatmul.f32.gmra.mxu0 %v402
        %v1736 = vpop.f32.mrf.mxu0
        %v1737 = vadd.f32 %v1624, %v1736
        %1738 = vmatmul.f32.gmra.mxu0 %v408
        %v1739 = vpop.f32.mrf.mxu0
        %v1740 = vadd.f32 %v1627, %v1739
        %1741 = vmatmul.f32.gmra.mxu0 %v414
        %v1742 = vpop.f32.mrf.mxu0
        %v1743 = vadd.f32 %v1630, %v1742
        %1744 = vdwg.mxu0
        %1745 = vmatpush.msra.mxu0 %v576
        %1746 = vmatpush.msra.mxu0 %v574
        %1747 = vmatpush.msra.mxu0 %v572
        %1748 = vmatpush.msra.mxu0 %v570
        %1749 = vmatpush.msra.mxu0 %v568
        %1750 = vmatpush.msra.mxu0 %v566
        %1751 = vmatpush.msra.mxu0 %v564
        %1752 = vmatpush.msra.mxu0 %v562
        %1753 = vmatpush.msra.mxu0 %v560
        %1754 = vmatpush.msra.mxu0 %v558
        %1755 = vmatpush.msra.mxu0 %v556
        %1756 = vmatpush.msra.mxu0 %v554
        %1757 = vmatpush.msra.mxu0 %v552
        %1758 = vmatpush.msra.mxu0 %v550
        %1759 = vmatpush.msra.mxu0 %v548
        %1760 = vmatpush.msra.mxu0 %v546
        %1761 = vmatmul.f32.gmra.mxu0 %v229
        %v1762 = vpop.f32.mrf.mxu0
        %v1763 = vadd.f32 %v1650, %v1762
        %1764 = vmatmul.f32.gmra.mxu0 %v235
        %v1765 = vpop.f32.mrf.mxu0
        %v1766 = vadd.f32 %v1653, %v1765
        %1767 = vmatmul.f32.gmra.mxu0 %v241
        %v1768 = vpop.f32.mrf.mxu0
        %v1769 = vadd.f32 %v1656, %v1768
        %1770 = vmatmul.f32.gmra.mxu0 %v247
        %v1771 = vpop.f32.mrf.mxu0
        %v1772 = vadd.f32 %v1659, %v1771
        %1773 = vmatmul.f32.gmra.mxu0 %v253
        %v1774 = vpop.f32.mrf.mxu0
        %v1775 = vadd.f32 %v1662, %v1774
        %1776 = vmatmul.f32.gmra.mxu0 %v259
        %v1777 = vpop.f32.mrf.mxu0
        %v1778 = vadd.f32 %v1665, %v1777
        %1779 = vmatmul.f32.gmra.mxu0 %v265
        %v1780 = vpop.f32.mrf.mxu0
        %v1781 = vadd.f32 %v1668, %v1780
        %1782 = vmatmul.f32.gmra.mxu0 %v271
        %v1783 = vpop.f32.mrf.mxu0
        %v1784 = vadd.f32 %v1671, %v1783
        %1785 = vmatmul.f32.gmra.mxu0 %v277
        %v1786 = vpop.f32.mrf.mxu0
        %v1787 = vadd.f32 %v1674, %v1786
        %1788 = vmatmul.f32.gmra.mxu0 %v283
        %v1789 = vpop.f32.mrf.mxu0
        %v1790 = vadd.f32 %v1677, %v1789
        %1791 = vmatmul.f32.gmra.mxu0 %v289
        %v1792 = vpop.f32.mrf.mxu0
        %v1793 = vadd.f32 %v1680, %v1792
        %1794 = vmatmul.f32.gmra.mxu0 %v295
        %v1795 = vpop.f32.mrf.mxu0
        %v1796 = vadd.f32 %v1683, %v1795
        %1797 = vmatmul.f32.gmra.mxu0 %v301
        %v1798 = vpop.f32.mrf.mxu0
        %v1799 = vadd.f32 %v1686, %v1798
        %1800 = vmatmul.f32.gmra.mxu0 %v307
        %v1801 = vpop.f32.mrf.mxu0
        %v1802 = vadd.f32 %v1689, %v1801
        %1803 = vmatmul.f32.gmra.mxu0 %v313
        %v1804 = vpop.f32.mrf.mxu0
        %v1805 = vadd.f32 %v1692, %v1804
        %1806 = vmatmul.f32.gmra.mxu0 %v319
        %v1807 = vpop.f32.mrf.mxu0
        %v1808 = vadd.f32 %v1695, %v1807
        %1809 = vmatmul.f32.gmra.mxu0 %v325
        %v1810 = vpop.f32.mrf.mxu0
        %v1811 = vadd.f32 %v1698, %v1810
        %1812 = vmatmul.f32.gmra.mxu0 %v331
        %v1813 = vpop.f32.mrf.mxu0
        %v1814 = vadd.f32 %v1701, %v1813
        %1815 = vmatmul.f32.gmra.mxu0 %v337
        %v1816 = vpop.f32.mrf.mxu0
        %v1817 = vadd.f32 %v1704, %v1816
        %1818 = vmatmul.f32.gmra.mxu0 %v343
        %v1819 = vpop.f32.mrf.mxu0
        %v1820 = vadd.f32 %v1707, %v1819
        %1821 = vmatmul.f32.gmra.mxu0 %v349
        %v1822 = vpop.f32.mrf.mxu0
        %v1823 = vadd.f32 %v1710, %v1822
        %1824 = vmatmul.f32.gmra.mxu0 %v355
        %v1825 = vpop.f32.mrf.mxu0
        %v1826 = vadd.f32 %v1713, %v1825
        %1827 = vmatmul.f32.gmra.mxu0 %v361
        %v1828 = vpop.f32.mrf.mxu0
        %v1829 = vadd.f32 %v1716, %v1828
        %1830 = vmatmul.f32.gmra.mxu0 %v367
        %v1831 = vpop.f32.mrf.mxu0
        %v1832 = vadd.f32 %v1719, %v1831
        %1833 = vmatmul.f32.gmra.mxu0 %v373
        %v1834 = vpop.f32.mrf.mxu0
        %v1835 = vadd.f32 %v1722, %v1834
        %1836 = vmatmul.f32.gmra.mxu0 %v379
        %v1837 = vpop.f32.mrf.mxu0
        %v1838 = vadd.f32 %v1725, %v1837
        %1839 = vmatmul.f32.gmra.mxu0 %v385
        %v1840 = vpop.f32.mrf.mxu0
        %v1841 = vadd.f32 %v1728, %v1840
        %1842 = vmatmul.f32.gmra.mxu0 %v391
        %v1843 = vpop.f32.mrf.mxu0
        %v1844 = vadd.f32 %v1731, %v1843
        %1845 = vmatmul.f32.gmra.mxu0 %v397
        %v1846 = vpop.f32.mrf.mxu0
        %v1847 = vadd.f32 %v1734, %v1846
        %1848 = vmatmul.f32.gmra.mxu0 %v403
        %v1849 = vpop.f32.mrf.mxu0
        %v1850 = vadd.f32 %v1737, %v1849
        %1851 = vmatmul.f32.gmra.mxu0 %v409
        %v1852 = vpop.f32.mrf.mxu0
        %v1853 = vadd.f32 %v1740, %v1852
        %1854 = vmatmul.f32.gmra.mxu0 %v415
        %v1855 = vpop.f32.mrf.mxu0
        %v1856 = vadd.f32 %v1743, %v1855
        %1857 = vdwg.mxu0
        %1858 = vmatpush.msra.mxu0 %v608
        %1859 = vmatpush.msra.mxu0 %v606
        %1860 = vmatpush.msra.mxu0 %v604
        %1861 = vmatpush.msra.mxu0 %v602
        %1862 = vmatpush.msra.mxu0 %v600
        %1863 = vmatpush.msra.mxu0 %v598
        %1864 = vmatpush.msra.mxu0 %v596
        %1865 = vmatpush.msra.mxu0 %v594
        %1866 = vmatpush.msra.mxu0 %v592
        %1867 = vmatpush.msra.mxu0 %v590
        %1868 = vmatpush.msra.mxu0 %v588
        %1869 = vmatpush.msra.mxu0 %v586
        %1870 = vmatpush.msra.mxu0 %v584
        %1871 = vmatpush.msra.mxu0 %v582
        %1872 = vmatpush.msra.mxu0 %v580
        %1873 = vmatpush.msra.mxu0 %v578
        %1874 = vmatmul.f32.gmra.mxu0 %v230
        %v1875 = vpop.f32.mrf.mxu0
        %v1876 = vadd.f32 %v1763, %v1875
        %1877 = vmatmul.f32.gmra.mxu0 %v236
        %v1878 = vpop.f32.mrf.mxu0
        %v1879 = vadd.f32 %v1766, %v1878
        %1880 = vmatmul.f32.gmra.mxu0 %v242
        %v1881 = vpop.f32.mrf.mxu0
        %v1882 = vadd.f32 %v1769, %v1881
        %1883 = vmatmul.f32.gmra.mxu0 %v248
        %v1884 = vpop.f32.mrf.mxu0
        %v1885 = vadd.f32 %v1772, %v1884
        %1886 = vmatmul.f32.gmra.mxu0 %v254
        %v1887 = vpop.f32.mrf.mxu0
        %v1888 = vadd.f32 %v1775, %v1887
        %1889 = vmatmul.f32.gmra.mxu0 %v260
        %v1890 = vpop.f32.mrf.mxu0
        %v1891 = vadd.f32 %v1778, %v1890
        %1892 = vmatmul.f32.gmra.mxu0 %v266
        %v1893 = vpop.f32.mrf.mxu0
        %v1894 = vadd.f32 %v1781, %v1893
        %1895 = vmatmul.f32.gmra.mxu0 %v272
        %v1896 = vpop.f32.mrf.mxu0
        %v1897 = vadd.f32 %v1784, %v1896
        %1898 = vmatmul.f32.gmra.mxu0 %v278
        %v1899 = vpop.f32.mrf.mxu0
        %v1900 = vadd.f32 %v1787, %v1899
        %1901 = vmatmul.f32.gmra.mxu0 %v284
        %v1902 = vpop.f32.mrf.mxu0
        %v1903 = vadd.f32 %v1790, %v1902
        %1904 = vmatmul.f32.gmra.mxu0 %v290
        %v1905 = vpop.f32.mrf.mxu0
        %v1906 = vadd.f32 %v1793, %v1905
        %1907 = vmatmul.f32.gmra.mxu0 %v296
        %v1908 = vpop.f32.mrf.mxu0
        %v1909 = vadd.f32 %v1796, %v1908
        %1910 = vmatmul.f32.gmra.mxu0 %v302
        %v1911 = vpop.f32.mrf.mxu0
        %v1912 = vadd.f32 %v1799, %v1911
        %1913 = vmatmul.f32.gmra.mxu0 %v308
        %v1914 = vpop.f32.mrf.mxu0
        %v1915 = vadd.f32 %v1802, %v1914
        %1916 = vmatmul.f32.gmra.mxu0 %v314
        %v1917 = vpop.f32.mrf.mxu0
        %v1918 = vadd.f32 %v1805, %v1917
        %1919 = vmatmul.f32.gmra.mxu0 %v320
        %v1920 = vpop.f32.mrf.mxu0
        %v1921 = vadd.f32 %v1808, %v1920
        %1922 = vmatmul.f32.gmra.mxu0 %v326
        %v1923 = vpop.f32.mrf.mxu0
        %v1924 = vadd.f32 %v1811, %v1923
        %1925 = vmatmul.f32.gmra.mxu0 %v332
        %v1926 = vpop.f32.mrf.mxu0
        %v1927 = vadd.f32 %v1814, %v1926
        %1928 = vmatmul.f32.gmra.mxu0 %v338
        %v1929 = vpop.f32.mrf.mxu0
        %v1930 = vadd.f32 %v1817, %v1929
        %1931 = vmatmul.f32.gmra.mxu0 %v344
        %v1932 = vpop.f32.mrf.mxu0
        %v1933 = vadd.f32 %v1820, %v1932
        %1934 = vmatmul.f32.gmra.mxu0 %v350
        %v1935 = vpop.f32.mrf.mxu0
        %v1936 = vadd.f32 %v1823, %v1935
        %1937 = vmatmul.f32.gmra.mxu0 %v356
        %v1938 = vpop.f32.mrf.mxu0
        %v1939 = vadd.f32 %v1826, %v1938
        %1940 = vmatmul.f32.gmra.mxu0 %v362
        %v1941 = vpop.f32.mrf.mxu0
        %v1942 = vadd.f32 %v1829, %v1941
        %1943 = vmatmul.f32.gmra.mxu0 %v368
        %v1944 = vpop.f32.mrf.mxu0
        %v1945 = vadd.f32 %v1832, %v1944
        %1946 = vmatmul.f32.gmra.mxu0 %v374
        %v1947 = vpop.f32.mrf.mxu0
        %v1948 = vadd.f32 %v1835, %v1947
        %1949 = vmatmul.f32.gmra.mxu0 %v380
        %v1950 = vpop.f32.mrf.mxu0
        %v1951 = vadd.f32 %v1838, %v1950
        %1952 = vmatmul.f32.gmra.mxu0 %v386
        %v1953 = vpop.f32.mrf.mxu0
        %v1954 = vadd.f32 %v1841, %v1953
        %1955 = vmatmul.f32.gmra.mxu0 %v392
        %v1956 = vpop.f32.mrf.mxu0
        %v1957 = vadd.f32 %v1844, %v1956
        %1958 = vmatmul.f32.gmra.mxu0 %v398
        %v1959 = vpop.f32.mrf.mxu0
        %v1960 = vadd.f32 %v1847, %v1959
        %1961 = vmatmul.f32.gmra.mxu0 %v404
        %v1962 = vpop.f32.mrf.mxu0
        %v1963 = vadd.f32 %v1850, %v1962
        %1964 = vmatmul.f32.gmra.mxu0 %v410
        %v1965 = vpop.f32.mrf.mxu0
        %v1966 = vadd.f32 %v1853, %v1965
        %1967 = vmatmul.f32.gmra.mxu0 %v416
        %v1968 = vpop.f32.mrf.mxu0
        %v1969 = vadd.f32 %v1856, %v1968
        %1970 = vdwg.mxu0
        %v1971 = vtanh.pop %v1198
        %v1972 = vtanh.pop %v1876
        %v1973 = vtanh.pop %v1201
        %v1974 = vtanh.pop %v1879
        %v1975 = vtanh.pop %v1204
        %v1976 = vtanh.pop %v1882
        %v1977 = vtanh.pop %v1207
        %v1978 = vtanh.pop %v1885
        %v1979 = vtanh.pop %v1210
        %v1980 = vtanh.pop %v1888
        %v1981 = vtanh.pop %v1213
        %v1982 = vtanh.pop %v1891
        %v1983 = vtanh.pop %v1216
        %v1984 = vtanh.pop %v1894
        %v1985 = vtanh.pop %v1219
        %v1986 = vtanh.pop %v1897
        %v1987 = vtanh.pop %v1222
        %v1988 = vtanh.pop %v1900
        %v1989 = vtanh.pop %v1225
        %v1990 = vtanh.pop %v1903
        %v1991 = vtanh.pop %v1228
        %v1992 = vtanh.pop %v1906
        %v1993 = vtanh.pop %v1231
        %v1994 = vtanh.pop %v1909
        %v1995 = vtanh.pop %v1234
        %v1996 = vtanh.pop %v1912
        %v1997 = vtanh.pop %v1237
        %v1998 = vtanh.pop %v1915
        %v1999 = vtanh.pop %v1240
        %v2000 = vtanh.pop %v1918
        %v2001 = vtanh.pop %v1243
        %v2002 = vtanh.pop %v1921
        %v2003 = vtanh.pop %v1246
        %v2004 = vtanh.pop %v1924
        %v2005 = vtanh.pop %v1249
        %v2006 = vtanh.pop %v1927
        %v2007 = vtanh.pop %v1252
        %v2008 = vtanh.pop %v1930
        %v2009 = vtanh.pop %v1255
        %v2010 = vtanh.pop %v1933
        %v2011 = vtanh.pop %v1258
        %v2012 = vtanh.pop %v1936
        %v2013 = vtanh.pop %v1261
        %v2014 = vtanh.pop %v1939
        %v2015 = vtanh.pop %v1264
        %v2016 = vtanh.pop %v1942
        %v2017 = vtanh.pop %v1267
        %v2018 = vtanh.pop %v1945
        %v2019 = vtanh.pop %v1270
        %v2020 = vtanh.pop %v1948
        %v2021 = vtanh.pop %v1273
        %v2022 = vtanh.pop %v1951
        %v2023 = vtanh.pop %v1276
        %v2024 = vtanh.pop %v1954
        %v2025 = vtanh.pop %v1279
        %v2026 = vtanh.pop %v1957
        %v2027 = vtanh.pop %v1282
        %v2028 = vtanh.pop %v1960
        %v2029 = vtanh.pop %v1285
        %v2030 = vtanh.pop %v1963
        %v2031 = vtanh.pop %v1288
        %v2032 = vtanh.pop %v1966
        %v2033 = vtanh.pop %v1291
        %v2034 = vtanh.pop %v1969
        %2035 = vst [vmem:[%s222] sm:$0xff] %v1971
        %2036 = vst [vmem:[%s222 + $0x8] sm:$0xff] %v1972
        %2037 = vst [vmem:[%s222 + $0x10] sm:$0xff] %v1973
        %2038 = vst [vmem:[%s222 + $0x18] sm:$0xff] %v1974
        %2039 = vst [vmem:[%s222 + $0x20] sm:$0xff] %v1975
        %2040 = vst [vmem:[%s222 + $0x28] sm:$0xff] %v1976
        %2041 = vst [vmem:[%s222 + $0x30] sm:$0xff] %v1977
        %2042 = vst [vmem:[%s222 + $0x38] sm:$0xff] %v1978
        %2043 = vst [vmem:[%s222 + $0x40] sm:$0xff] %v1979
        %2044 = vst [vmem:[%s222 + $0x48] sm:$0xff] %v1980
        %2045 = vst [vmem:[%s222 + $0x50] sm:$0xff] %v1981
        %2046 = vst [vmem:[%s222 + $0x58] sm:$0xff] %v1982
        %2047 = vst [vmem:[%s222 + $0x60] sm:$0xff] %v1983
        %2048 = vst [vmem:[%s222 + $0x68] sm:$0xff] %v1984
        %2049 = vst [vmem:[%s222 + $0x70] sm:$0xff] %v1985
        %2050 = vst [vmem:[%s222 + $0x78] sm:$0xff] %v1986
        %2051 = vst [vmem:[%s222 + $0x80] sm:$0xff] %v1987
        %2052 = vst [vmem:[%s222 + $0x88] sm:$0xff] %v1988
        %2053 = vst [vmem:[%s222 + $0x90] sm:$0xff] %v1989
        %2054 = vst [vmem:[%s222 + $0x98] sm:$0xff] %v1990
        %2055 = vst [vmem:[%s222 + $0xa0] sm:$0xff] %v1991
        %2056 = vst [vmem:[%s222 + $0xa8] sm:$0xff] %v1992
        %2057 = vst [vmem:[%s222 + $0xb0] sm:$0xff] %v1993
        %2058 = vst [vmem:[%s222 + $0xb8] sm:$0xff] %v1994
        %2059 = vst [vmem:[%s222 + $0xc0] sm:$0xff] %v1995
        %2060 = vst [vmem:[%s222 + $0xc8] sm:$0xff] %v1996
        %2061 = vst [vmem:[%s222 + $0xd0] sm:$0xff] %v1997
        %2062 = vst [vmem:[%s222 + $0xd8] sm:$0xff] %v1998
        %2063 = vst [vmem:[%s222 + $0xe0] sm:$0xff] %v1999
        %2064 = vst [vmem:[%s222 + $0xe8] sm:$0xff] %v2000
        %2065 = vst [vmem:[%s222 + $0xf0] sm:$0xff] %v2001
        %2066 = vst [vmem:[%s222 + $0xf8] sm:$0xff] %v2002
        %2067 = vst [vmem:[%s222 + $0x100] sm:$0xff] %v2003
        %2068 = vst [vmem:[%s222 + $0x108] sm:$0xff] %v2004
        %2069 = vst [vmem:[%s222 + $0x110] sm:$0xff] %v2005
        %2070 = vst [vmem:[%s222 + $0x118] sm:$0xff] %v2006
        %2071 = vst [vmem:[%s222 + $0x120] sm:$0xff] %v2007
        %2072 = vst [vmem:[%s222 + $0x128] sm:$0xff] %v2008
        %2073 = vst [vmem:[%s222 + $0x130] sm:$0xff] %v2009
        %2074 = vst [vmem:[%s222 + $0x138] sm:$0xff] %v2010
        %2075 = vst [vmem:[%s222 + $0x140] sm:$0xff] %v2011
        %2076 = vst [vmem:[%s222 + $0x148] sm:$0xff] %v2012
        %2077 = vst [vmem:[%s222 + $0x150] sm:$0xff] %v2013
        %2078 = vst [vmem:[%s222 + $0x158] sm:$0xff] %v2014
        %2079 = vst [vmem:[%s222 + $0x160] sm:$0xff] %v2015
        %2080 = vst [vmem:[%s222 + $0x168] sm:$0xff] %v2016
        %2081 = vst [vmem:[%s222 + $0x170] sm:$0xff] %v2017
        %2082 = vst [vmem:[%s222 + $0x178] sm:$0xff] %v2018
        %2083 = vst [vmem:[%s222 + $0x180] sm:$0xff] %v2019
        %2084 = vst [vmem:[%s222 + $0x188] sm:$0xff] %v2020
        %2085 = vst [vmem:[%s222 + $0x190] sm:$0xff] %v2021
        %2086 = vst [vmem:[%s222 + $0x198] sm:$0xff] %v2022
        %2087 = vst [vmem:[%s222 + $0x1a0] sm:$0xff] %v2023
        %2088 = vst [vmem:[%s222 + $0x1a8] sm:$0xff] %v2024
        %2089 = vst [vmem:[%s222 + $0x1b0] sm:$0xff] %v2025
        %2090 = vst [vmem:[%s222 + $0x1b8] sm:$0xff] %v2026
        %2091 = vst [vmem:[%s222 + $0x1c0] sm:$0xff] %v2027
        %2092 = vst [vmem:[%s222 + $0x1c8] sm:$0xff] %v2028
        %2093 = vst [vmem:[%s222 + $0x1d0] sm:$0xff] %v2029
        %2094 = vst [vmem:[%s222 + $0x1d8] sm:$0xff] %v2030
        %2095 = vst [vmem:[%s222 + $0x1e0] sm:$0xff] %v2031
        %2096 = vst [vmem:[%s222 + $0x1e8] sm:$0xff] %v2032
        %2097 = vst [vmem:[%s222 + $0x1f0] sm:$0xff] %v2033
        %2098 = vst [vmem:[%s222 + $0x1f8] sm:$0xff] %v2034
        %s2099 = sand.u32 %s97, 1
        %s2100 = scalar_lea.sflag [#allocation4], %s2099
        %s2101 = sand.u32 %s97, 1
        %s2102 = smul.addr %s2101, 512
        %s2103 = scalar_lea.vmem [#allocation8], %s2102
        // Predicated region
        $region45: #{tpu_custom_call.1} parent=31 // pred_check
          %p2104 = pneg %p107
        $region46: #{tpu_custom_call.1} parent=31 // pred_check_branch
          %2106 = sbr.rel (%p2104) target = $region48
        $region47: #{tpu_custom_call.1} parent=31 // pred_region
          %s2107 = smul.u32 32, %s21
          %2109 = vsyncadd %s2100, 0
          %s2110 = smul.addr %s2107, 2
          %s2111 = smul.addr %s2110, 8
          %s2112 = scalar_lea.hbm %s3, %s2111
          %s2113 = sshll.u32 %s2103, 4
          %s2114 = int_to_ptr.vmem [resolvable:$true] %s2113
          %s2115 = sshll.u32 %s2112, 4
          %s2116 = int_to_ptr.hbm [resolvable:$true] %s2115
          %2121 = dma.vmem_to_hbm [thread:$0]  %s2114, 8192, %s2116, %s2100, 256, 256, 16
        $region48: #{tpu_custom_call.1} parent=31 // pred_fallthru
          _
      $region32: #{tpu_custom_call.1} parent=5 // pred_fallthru
        _
      %p2122 = scmp.le.s32.totalorder 2, %s16
      // Predicated region
      $region49: #{tpu_custom_call.1} parent=5 // pred_check
        %p2123 = pneg %p2122
      $region50: #{tpu_custom_call.1} parent=5 // pred_check_branch
        %2125 = sbr.rel (%p2123) target = $region52
      $region51: #{tpu_custom_call.1} parent=5 // pred_region
        %s2126 = ssub.s32 %s16, 2
        // Predicated region
        $region53: #{tpu_custom_call.1} parent=51 // pred_check
          %p2127 = pneg %p113
        $region54: #{tpu_custom_call.1} parent=51 // pred_check_branch
          %2129 = sbr.rel (%p2127) target = $region56
        $region55: #{tpu_custom_call.1} parent=51 // pred_region
          %s2130 = sand.u32 %s98, 1
          %s2131 = scalar_lea.sflag [#allocation4], %s2130
          %s2132 = sand.u32 %s98, 1
          %s2133 = smul.addr %s2132, 512
          %s2134 = scalar_lea.vmem [#allocation8], %s2133
          %2136 = dma.done %s2131, 8192
        $region56: #{tpu_custom_call.1} parent=51 // pred_fallthru
          _
      $region52: #{tpu_custom_call.1} parent=5 // pred_fallthru
        _
    $region6: #{tpu_custom_call.1} parent=1 // loop_footer
      %s20 = sadd.s32 1, %s16
    $region7: #{tpu_custom_call.1} parent=1 // loop_footer_branch
      %15 = sbr.rel target = $region3
    $region8: #{tpu_custom_call.1} parent=1 // loop_exit
      _
    %2137 = vsyncpa [#allocation3], 1
    %s2138 = scalar_lea.sflag [#allocation3], 1
    %2139 = vsyncpa %s2138, 1
    %2140 = vsyncpa [#allocation6], 1
    %2141 = vsyncpa [#allocation4], 1
    %s2142 = scalar_lea.sflag [#allocation4], 1
    %2143 = vsyncpa %s2142, 1

</llo_original>
